<compile_context>
chip_gen: v6e
topology: v6e:2x2x1
jax: 0.10.0
libtpu: 0.0.40
codegen_flags: <defaults>
</compile_context>

<pallas_src>
import jax
import jax.numpy as jnp
from jax.experimental import pallas as pl
from jax.experimental.pallas import tpu as pltpu


OUT_PAD = 128  # lane-dense output slab width


# -----------------------------------------------------------------------------
# Pallas kernel: fused CGC block (gates + experts + towers + final dot product)
# -----------------------------------------------------------------------------
def _cgc_tower_kernel(
    u_ref, v_ref,                                   # (TB, D) user / item embeddings
    # user branch (expert slot 0 = task-specific expert of the selected domain)
    uW1, ub1, uW2, ub2,                             # (E+1, D, H0)/(E+1,1,H0), (E+1,H0,H1)/(E+1,1,H1)
    uWg, ubg,                                       # (D, E+1), (1, E+1)
    uW3, ub3, uW4, ub4,                             # (H1, H2)/(1,H2), (H2, H3)/(1,H3)
    # item branch (same shapes)
    iW1, ib1, iW2, ib2, iWg, ibg, iW3, ib3, iW4, ib4,
    o_ref,                                          # (TB, OUT_PAD) padded logits slab
):
    def branch(x, W1, b1, W2, b2, Wg, bg, W3, b3, W4, b4):
        cdt = W3.dtype                    # compute dtype of the matmul operands
        xc = x.astype(cdt)

        # gate for the selected domain: softmax over experts (f32 epilogue)
        gl = jnp.dot(xc, Wg[...], preferred_element_type=jnp.float32) + bg[...]
        gl = gl - jnp.max(gl, axis=-1, keepdims=True)
        ge = jnp.exp(gl)
        g = ge / jnp.sum(ge, axis=-1, keepdims=True)          # (TB, E+1)

        n_exp = W1.shape[0]
        mix = None
        for e in range(n_exp):            # static unroll, E+1 is small
            h = jnp.dot(xc, W1[e], preferred_element_type=jnp.float32) + b1[e]
            h = jnp.maximum(h, 0.0)
            h = jnp.dot(h.astype(cdt), W2[e], preferred_element_type=jnp.float32) + b2[e]
            h = jnp.maximum(h, 0.0)
            contrib = h * g[:, e:e + 1]
            mix = contrib if mix is None else mix + contrib   # (TB, H1)

        h = jnp.dot(mix.astype(cdt), W3[...], preferred_element_type=jnp.float32) + b3[...]
        h = jnp.maximum(h, 0.0)
        h = jnp.dot(h.astype(cdt), W4[...], preferred_element_type=jnp.float32) + b4[...]
        return jnp.maximum(h, 0.0)                            # (TB, H3)

    u_out = branch(u_ref[...], uW1, ub1, uW2, ub2, uWg, ubg, uW3, ub3, uW4, ub4)
    i_out = branch(v_ref[...], iW1, ib1, iW2, ib2, iWg, ibg, iW3, ib3, iW4, ib4)

    logit = jnp.sum(u_out * i_out, axis=-1, keepdims=True)    # (TB, 1)
    lane = jax.lax.broadcasted_iota(jnp.int32, o_ref.shape, 1)
    o_ref[...] = jnp.where(lane == 0, logit, 0.0).astype(o_ref.dtype)


# -----------------------------------------------------------------------------
# Wrapper glue: BN folding, expert stacking, tiling, pallas_call
# -----------------------------------------------------------------------------
def _fold_linear_bn(w, b, bn, eps=1e-5):
    """Fold eval-mode BatchNorm1d into the preceding Linear (W', b')."""
    gamma, beta, mean, var = bn
    s = gamma / jnp.sqrt(var + eps)
    return w * s[None, :], b * s + (beta - mean * s)


def _prepare_branch(bp, domain, compute_dtype):
    """Fold BN, stack experts (slot 0 = task expert of `domain`), cast weights."""
    l1 = [_fold_linear_bn(*bp["task_l1"][domain])] + \
         [_fold_linear_bn(*m) for m in bp["shared_l1"]]
    l2 = [_fold_linear_bn(*bp["task_l2"][domain])] + \
         [_fold_linear_bn(*m) for m in bp["shared_l2"]]
    W1 = jnp.stack([w for w, _ in l1]).astype(compute_dtype)     # (E+1, D, H0)
    b1 = jnp.stack([b[None, :] for _, b in l1])                  # (E+1, 1, H0) f32
    W2 = jnp.stack([w for w, _ in l2]).astype(compute_dtype)     # (E+1, H0, H1)
    b2 = jnp.stack([b[None, :] for _, b in l2])                  # (E+1, 1, H1) f32
    Wg, bg = bp["gate"][domain]
    W3, b3 = _fold_linear_bn(*bp["l3"][domain])
    W4, b4 = bp["l4"][domain]
    return (W1, b1, W2, b2,
            Wg.astype(compute_dtype), bg[None, :].astype(jnp.float32),
            W3.astype(compute_dtype), b3[None, :],
            W4.astype(compute_dtype), b4[None, :])


def cgc_forward(params, user_indices, item_indices, domain_idc, *,
                training=False, num_class=None, use_bf16=True, tile_b=None):
    domain = int(domain_idc)  # domain indexes ModuleLists in PyTorch -> static
    compute_dtype = jnp.bfloat16 if use_bf16 else jnp.float32

    # ---- glue: embedding gather ----
    u = jnp.take(params["emb_user"], user_indices, axis=0)      # (B, D) f32
    v = jnp.take(params["emb_item"], item_indices, axis=0)      # (B, D) f32
    B, D = u.shape

    user_arrs = _prepare_branch(params["user"], domain, compute_dtype)
    item_arrs = _prepare_branch(params["item"], domain, compute_dtype)

    # ---- batch tiling: whole batch if small, otherwise 256-row tiles ----
    if tile_b is None:
        tile_b = B if B <= 256 else 256
    Bp = ((B + tile_b - 1) // tile_b) * tile_b
    if Bp != B:
        u = jnp.pad(u, ((0, Bp - B), (0, 0)))
        v = jnp.pad(v, ((0, Bp - B), (0, 0)))

    def row_spec():
        return pl.BlockSpec((tile_b, D), lambda i: (i, 0))

    rep2 = lambda a: pl.BlockSpec(a.shape, lambda i: (0, 0))
    rep3 = lambda a: pl.BlockSpec(a.shape, lambda i: (0, 0, 0))

    def branch_specs(arrs):
        W1, b1, W2, b2, Wg, bg, W3, b3, W4, b4 = arrs
        return [rep3(W1), rep3(b1), rep3(W2), rep3(b2),
                rep2(Wg), rep2(bg), rep2(W3), rep2(b3), rep2(W4), rep2(b4)]

    in_specs = [row_spec(), row_spec()] + branch_specs(user_arrs) + branch_specs(item_arrs)

    # ---- advisory cost estimate for the XLA scheduler ----
    n_exp, _, H0 = user_arrs[0].shape
    H1 = user_arrs[2].shape[2]
    G = user_arrs[4].shape[1]
    H2 = user_arrs[6].shape[1]
    H3 = user_arrs[8].shape[1]
    flops_branch = n_exp * (2 * D * H0 + 2 * H0 * H1) + 2 * D * G + 2 * H1 * H2 + 2 * H2 * H3
    in_bytes = (u.size * u.dtype.itemsize + v.size * v.dtype.itemsize
                + sum(a.size * a.dtype.itemsize for a in user_arrs + item_arrs))
    cost = pl.CostEstimate(
        flops=int(Bp * (2 * flops_branch + 2 * H3)),
        transcendentals=int(2 * Bp * G),
        bytes_accessed=int(in_bytes + Bp * OUT_PAD * 4),
    )

    out = pl.pallas_call(
        _cgc_tower_kernel,
        out_shape=jax.ShapeDtypeStruct((Bp, OUT_PAD), jnp.float32),
        grid_spec=pltpu.PrefetchScalarGridSpec(
            num_scalar_prefetch=0,
            grid=(Bp // tile_b,),
            in_specs=in_specs,
            out_specs=pl.BlockSpec((tile_b, OUT_PAD), lambda i: (i, 0)),
        ),
        compiler_params=pltpu.CompilerParams(
            dimension_semantics=("parallel",),   # batch axis -> megacore on v7x
            vmem_limit_bytes=32 * 1024 * 1024,
        ),
        cost_estimate=cost,
    )(u, v, *user_arrs, *item_arrs)

    logits = out[:B, :1]                      # == logits.view(-1, 1) (eval path)
    if training:
        probs = jax.nn.softmax(logits.reshape(-1, num_class), axis=1)
        return probs.reshape(-1, 1)
    return logits


# -----------------------------------------------------------------------------
# Deterministic parameter init (mirrors nn.Embedding / nn.Linear / BatchNorm1d)
# -----------------------------------------------------------------------------
def init_params(key, cfg):
    D = cfg["latent_dim"]
    H0, H1, H2, H3 = cfg["hidden_units"]
    E, T = cfg["num_shared_experts"], cfg["num_tasks"]
    G = E + 1
    key_iter = iter(jax.random.split(key, 512))
    nk = lambda: next(key_iter)

    def linear(fan_in, fan_out):
        kw, kb = jax.random.split(nk())
        bound = 1.0 / jnp.sqrt(fan_in)
        w = jax.random.uniform(kw, (fan_in, fan_out), jnp.float32, -bound, bound)
        b = jax.random.uniform(kb, (fan_out,), jnp.float32, -bound, bound)
        return w, b

    def bn(n):
        k1, k2 = jax.random.split(nk())
        gamma = 1.0 + 0.1 * jax.random.normal(k1, (n,), jnp.float32)
        beta = 0.1 * jax.random.normal(k2, (n,), jnp.float32)
        mean = 0.05 * jnp.arange(n, dtype=jnp.float32) / n
        var = 1.0 + 0.01 * jnp.arange(n, dtype=jnp.float32) / n
        return gamma, beta, mean, var

    def mlp_bn(fi, fo):
        w, b = linear(fi, fo)
        return (w, b, bn(fo))

    def branch():
        return {
            "task_l1": [mlp_bn(D, H0) for _ in range(T)],
            "task_l2": [mlp_bn(H0, H1) for _ in range(T)],
            "shared_l1": [mlp_bn(D, H0) for _ in range(E)],
            "shared_l2": [mlp_bn(H0, H1) for _ in range(E)],
            "gate": [linear(D, G) for _ in range(T)],
            "l3": [mlp_bn(H1, H2) for _ in range(T)],
            "l4": [linear(H2, H3) for _ in range(T)],
        }

    return {
        "emb_user": jax.random.normal(nk(), (cfg["num_users"], D), jnp.float32),
        "emb_item": jax.random.normal(nk(), (cfg["num_items"], D), jnp.float32),
        "user": branch(),
        "item": branch(),
    }


# -----------------------------------------------------------------------------
# Pure-JAX reference (faithful to PyTorch CGC.forward, eval mode)
# -----------------------------------------------------------------------------
def reference_forward(params, user_idx, item_idx, domain):
    x_u = params["emb_user"][user_idx]
    x_i = params["emb_item"][item_idx]

    def bn_eval(h, bn, eps=1e-5):
        gamma, beta, mean, var = bn
        return gamma * (h - mean) / jnp.sqrt(var + eps) + beta

    def mlp(x, w, b, bn=None, relu=True):
        h = x @ w + b
        if bn is not None:
            h = bn_eval(h, bn)
        return jax.nn.relu(h) if relu else h

    def branch(x, bp):
        w, b, bn = bp["task_l1"][domain]; t = mlp(x, w, b, bn)
        w, b, bn = bp["task_l2"][domain]; t = mlp(t, w, b, bn)
        shared = []
        for e in range(len(bp["shared_l1"])):
            w, b, bn = bp["shared_l1"][e]; s = mlp(x, w, b, bn)
            w, b, bn = bp["shared_l2"][e]; s = mlp(s, w, b, bn)
            shared.append(s)
        experts = jnp.stack([t] + shared, axis=-1)                       # (B, H1, E+1)
        gates = jnp.stack([jax.nn.softmax(x @ w + b, axis=1)
                           for (w, b) in bp["gate"]], axis=-1)           # (B, E+1, T)
        weighted = jnp.einsum('abc,acd->abd', experts, gates)[:, :, domain]
        w, b, bn = bp["l3"][domain]; h = mlp(weighted, w, b, bn)
        w, b = bp["l4"][domain]; h = mlp(h, w, b, None)
        return h

    u = branch(x_u, params["user"])
    i = branch(x_i, params["item"])
    return jnp.sum(u * i, axis=1, keepdims=True)       # eval: logits.view(-1, 1)


if __name__ == "__main__":
    config = dict(
        num_users=10, num_items=20, latent_dim=32,
        hidden_units=[64, 32, 16, 8],
        num_negative=3, num_shared_experts=2, num_tasks=2,
        embedding_user=None, embedding_item=None,
    )
    num_class = config["num_negative"] + 1            # 4
    batch = 2 * num_class                             # 8 (user, item) pairs
    domain_idc = 1

    key = jax.random.PRNGKey(0)
    kp, ku, ki = jax.random.split(key, 3)
    params = init_params(kp, config)
    user_idx = jax.random.randint(ku, (batch,), 0, config["num_users"])
    item_idx = jax.random.randint(ki, (batch,), 0, config["num_items"])

    ref = jax.block_until_ready(reference_forward(params, user_idx, item_idx, domain_idc))

    # f32 matmul path (keeps v5e-safe element-wise math), tight check
    out_f32 = jax.block_until_ready(
        cgc_forward(params, user_idx, item_idx, domain_idc, use_bf16=False))
    assert out_f32.shape == (batch, 1)
    assert jnp.allclose(out_f32, ref, atol=2e-3, rtol=2e-3), "f32 kernel mismatch vs reference"

    # bf16 matmul path (MXU-native on v6e/v7x; f32 accumulation), looser check
    out_bf16 = jax.block_until_ready(
        cgc_forward(params, user_idx, item_idx, domain_idc, use_bf16=True))
    assert out_bf16.shape == (batch, 1)
    assert jnp.allclose(out_bf16, ref, atol=5e-2, rtol=5e-2), "bf16 kernel mismatch vs reference"

    print("KERNEL_OK")
</pallas_src>

<mosaic_0001>
module attributes {stable_mosaic.version = 11 : i64} {
  func.func @_cgc_tower_kernel(%arg0: i32, %arg1: memref<8x32xf32, #tpu.memory_space<vmem>>, %arg2: memref<8x32xf32, #tpu.memory_space<vmem>>, %arg3: memref<3x32x64xf32, #tpu.memory_space<vmem>>, %arg4: memref<3x1x64xf32, #tpu.memory_space<vmem>>, %arg5: memref<3x64x32xf32, #tpu.memory_space<vmem>>, %arg6: memref<3x1x32xf32, #tpu.memory_space<vmem>>, %arg7: memref<32x3xf32, #tpu.memory_space<vmem>>, %arg8: memref<1x3xf32, #tpu.memory_space<vmem>>, %arg9: memref<32x16xf32, #tpu.memory_space<vmem>>, %arg10: memref<1x16xf32, #tpu.memory_space<vmem>>, %arg11: memref<16x8xf32, #tpu.memory_space<vmem>>, %arg12: memref<1x8xf32, #tpu.memory_space<vmem>>, %arg13: memref<3x32x64xf32, #tpu.memory_space<vmem>>, %arg14: memref<3x1x64xf32, #tpu.memory_space<vmem>>, %arg15: memref<3x64x32xf32, #tpu.memory_space<vmem>>, %arg16: memref<3x1x32xf32, #tpu.memory_space<vmem>>, %arg17: memref<32x3xf32, #tpu.memory_space<vmem>>, %arg18: memref<1x3xf32, #tpu.memory_space<vmem>>, %arg19: memref<32x16xf32, #tpu.memory_space<vmem>>, %arg20: memref<1x16xf32, #tpu.memory_space<vmem>>, %arg21: memref<16x8xf32, #tpu.memory_space<vmem>>, %arg22: memref<1x8xf32, #tpu.memory_space<vmem>>, %arg23: memref<8x128xf32, #tpu.memory_space<vmem>>) attributes {dimension_semantics = [#tpu.dimension_semantics<parallel>], iteration_bounds = array<i64: 1>, scalar_prefetch = 0 : i64, scratch_operands = 0 : i64, tpu.core_type = #tpu.core_type<tc>, window_params = [{transform_indices = @transform_0, window_bounds = array<i64: 8, 32>}, {transform_indices = @transform_1, window_bounds = array<i64: 8, 32>}, {pipeline_mode = #tpu.pipeline_mode<synchronous>, transform_indices = @transform_2, window_bounds = array<i64: 3, 32, 64>}, {pipeline_mode = #tpu.pipeline_mode<synchronous>, transform_indices = @transform_3, window_bounds = array<i64: 3, 1, 64>}, {pipeline_mode = #tpu.pipeline_mode<synchronous>, transform_indices = @transform_4, window_bounds = array<i64: 3, 64, 32>}, {pipeline_mode = #tpu.pipeline_mode<synchronous>, transform_indices = @transform_5, window_bounds = array<i64: 3, 1, 32>}, {pipeline_mode = #tpu.pipeline_mode<synchronous>, transform_indices = @transform_6, window_bounds = array<i64: 32, 3>}, {pipeline_mode = #tpu.pipeline_mode<synchronous>, transform_indices = @transform_7, window_bounds = array<i64: 1, 3>}, {pipeline_mode = #tpu.pipeline_mode<synchronous>, transform_indices = @transform_8, window_bounds = array<i64: 32, 16>}, {pipeline_mode = #tpu.pipeline_mode<synchronous>, transform_indices = @transform_9, window_bounds = array<i64: 1, 16>}, {pipeline_mode = #tpu.pipeline_mode<synchronous>, transform_indices = @transform_10, window_bounds = array<i64: 16, 8>}, {pipeline_mode = #tpu.pipeline_mode<synchronous>, transform_indices = @transform_11, window_bounds = array<i64: 1, 8>}, {pipeline_mode = #tpu.pipeline_mode<synchronous>, transform_indices = @transform_12, window_bounds = array<i64: 3, 32, 64>}, {pipeline_mode = #tpu.pipeline_mode<synchronous>, transform_indices = @transform_13, window_bounds = array<i64: 3, 1, 64>}, {pipeline_mode = #tpu.pipeline_mode<synchronous>, transform_indices = @transform_14, window_bounds = array<i64: 3, 64, 32>}, {pipeline_mode = #tpu.pipeline_mode<synchronous>, transform_indices = @transform_15, window_bounds = array<i64: 3, 1, 32>}, {pipeline_mode = #tpu.pipeline_mode<synchronous>, transform_indices = @transform_16, window_bounds = array<i64: 32, 3>}, {pipeline_mode = #tpu.pipeline_mode<synchronous>, transform_indices = @transform_17, window_bounds = array<i64: 1, 3>}, {pipeline_mode = #tpu.pipeline_mode<synchronous>, transform_indices = @transform_18, window_bounds = array<i64: 32, 16>}, {pipeline_mode = #tpu.pipeline_mode<synchronous>, transform_indices = @transform_19, window_bounds = array<i64: 1, 16>}, {pipeline_mode = #tpu.pipeline_mode<synchronous>, transform_indices = @transform_20, window_bounds = array<i64: 16, 8>}, {pipeline_mode = #tpu.pipeline_mode<synchronous>, transform_indices = @transform_21, window_bounds = array<i64: 1, 8>}, {transform_indices = @transform_22, window_bounds = array<i64: 8, 128>}]} {
    %c0 = arith.constant 0 : index
    %c0_0 = arith.constant 0 : index
    %0 = vector.load %arg1[%c0, %c0_0] : memref<8x32xf32, #tpu.memory_space<vmem>>, vector<8x32xf32>
    %c0_1 = arith.constant 0 : index
    %c0_2 = arith.constant 0 : index
    %1 = vector.load %arg7[%c0_1, %c0_2] : memref<32x3xf32, #tpu.memory_space<vmem>>, vector<32x3xf32>
    %cst = arith.constant dense<0.000000e+00> : vector<8x3xf32>
    %2 = tpu.matmul %0, %1, %cst {dimension_numbers = #tpu.dot_dimension_numbers<[1], [0], [0], [1], [0, 0, 1, 1], [], []>} : vector<8x32xf32>, vector<32x3xf32>, vector<8x3xf32> -> vector<8x3xf32>
    %c0_3 = arith.constant 0 : index
    %c0_4 = arith.constant 0 : index
    %3 = vector.load %arg8[%c0_3, %c0_4] : memref<1x3xf32, #tpu.memory_space<vmem>>, vector<1x3xf32>
    %4 = vector.broadcast %3 : vector<1x3xf32> to vector<8x3xf32>
    %5 = arith.addf %2, %4 : vector<8x3xf32>
    %cst_5 = arith.constant dense<0xFF800000> : vector<8xf32>
    %6 = vector.multi_reduction <maximumf>, %5, %cst_5 [1] : vector<8x3xf32> to vector<8xf32>
    %7 = vector.shape_cast %6 : vector<8xf32> to vector<8x1xf32>
    %8 = vector.broadcast %7 : vector<8x1xf32> to vector<8x3xf32>
    %9 = arith.subf %5, %8 : vector<8x3xf32>
    %10 = math.exp %9 : vector<8x3xf32>
    %cst_6 = arith.constant dense<0.000000e+00> : vector<8xf32>
    %11 = vector.multi_reduction <add>, %10, %cst_6 [1] : vector<8x3xf32> to vector<8xf32>
    %12 = vector.shape_cast %11 : vector<8xf32> to vector<8x1xf32>
    %13 = vector.broadcast %12 : vector<8x1xf32> to vector<8x3xf32>
    %14 = arith.divf %10, %13 : vector<8x3xf32>
    %c0_7 = arith.constant 0 : index
    %c0_8 = arith.constant 0 : index
    %c0_9 = arith.constant 0 : index
    %15 = vector.load %arg3[%c0_7, %c0_8, %c0_9] : memref<3x32x64xf32, #tpu.memory_space<vmem>>, vector<1x32x64xf32>
    %16 = vector.shape_cast %15 : vector<1x32x64xf32> to vector<32x64xf32>
    %cst_10 = arith.constant dense<0.000000e+00> : vector<8x64xf32>
    %17 = tpu.matmul %0, %16, %cst_10 {dimension_numbers = #tpu.dot_dimension_numbers<[1], [0], [0], [1], [0, 0, 1, 1], [], []>} : vector<8x32xf32>, vector<32x64xf32>, vector<8x64xf32> -> vector<8x64xf32>
    %c0_11 = arith.constant 0 : index
    %c0_12 = arith.constant 0 : index
    %c0_13 = arith.constant 0 : index
    %18 = vector.load %arg4[%c0_11, %c0_12, %c0_13] : memref<3x1x64xf32, #tpu.memory_space<vmem>>, vector<1x1x64xf32>
    %19 = vector.shape_cast %18 : vector<1x1x64xf32> to vector<1x64xf32>
    %20 = vector.broadcast %19 : vector<1x64xf32> to vector<8x64xf32>
    %21 = arith.addf %17, %20 : vector<8x64xf32>
    %cst_14 = arith.constant 0.000000e+00 : f32
    %22 = vector.broadcast %cst_14 : f32 to vector<8x64xf32>
    %23 = arith.maximumf %21, %22 : vector<8x64xf32>
    %c0_15 = arith.constant 0 : index
    %c0_16 = arith.constant 0 : index
    %c0_17 = arith.constant 0 : index
    %24 = vector.load %arg5[%c0_15, %c0_16, %c0_17] : memref<3x64x32xf32, #tpu.memory_space<vmem>>, vector<1x64x32xf32>
    %25 = vector.shape_cast %24 : vector<1x64x32xf32> to vector<64x32xf32>
    %cst_18 = arith.constant dense<0.000000e+00> : vector<8x32xf32>
    %26 = tpu.matmul %23, %25, %cst_18 {dimension_numbers = #tpu.dot_dimension_numbers<[1], [0], [0], [1], [0, 0, 1, 1], [], []>} : vector<8x64xf32>, vector<64x32xf32>, vector<8x32xf32> -> vector<8x32xf32>
    %c0_19 = arith.constant 0 : index
    %c0_20 = arith.constant 0 : index
    %c0_21 = arith.constant 0 : index
    %27 = vector.load %arg6[%c0_19, %c0_20, %c0_21] : memref<3x1x32xf32, #tpu.memory_space<vmem>>, vector<1x1x32xf32>
    %28 = vector.shape_cast %27 : vector<1x1x32xf32> to vector<1x32xf32>
    %29 = vector.broadcast %28 : vector<1x32xf32> to vector<8x32xf32>
    %30 = arith.addf %26, %29 : vector<8x32xf32>
    %cst_22 = arith.constant 0.000000e+00 : f32
    %31 = vector.broadcast %cst_22 : f32 to vector<8x32xf32>
    %32 = arith.maximumf %30, %31 : vector<8x32xf32>
    %33 = vector.extract_strided_slice %14 {offsets = [0, 0], sizes = [8, 1], strides = [1, 1]} : vector<8x3xf32> to vector<8x1xf32>
    %34 = vector.broadcast %33 : vector<8x1xf32> to vector<8x32xf32>
    %35 = arith.mulf %32, %34 : vector<8x32xf32>
    %c1 = arith.constant 1 : index
    %c0_23 = arith.constant 0 : index
    %c0_24 = arith.constant 0 : index
    %36 = vector.load %arg3[%c1, %c0_23, %c0_24] : memref<3x32x64xf32, #tpu.memory_space<vmem>>, vector<1x32x64xf32>
    %37 = vector.shape_cast %36 : vector<1x32x64xf32> to vector<32x64xf32>
    %cst_25 = arith.constant dense<0.000000e+00> : vector<8x64xf32>
    %38 = tpu.matmul %0, %37, %cst_25 {dimension_numbers = #tpu.dot_dimension_numbers<[1], [0], [0], [1], [0, 0, 1, 1], [], []>} : vector<8x32xf32>, vector<32x64xf32>, vector<8x64xf32> -> vector<8x64xf32>
    %c1_26 = arith.constant 1 : index
    %c0_27 = arith.constant 0 : index
    %c0_28 = arith.constant 0 : index
    %39 = vector.load %arg4[%c1_26, %c0_27, %c0_28] : memref<3x1x64xf32, #tpu.memory_space<vmem>>, vector<1x1x64xf32>
    %40 = vector.shape_cast %39 : vector<1x1x64xf32> to vector<1x64xf32>
    %41 = vector.broadcast %40 : vector<1x64xf32> to vector<8x64xf32>
    %42 = arith.addf %38, %41 : vector<8x64xf32>
    %cst_29 = arith.constant 0.000000e+00 : f32
    %43 = vector.broadcast %cst_29 : f32 to vector<8x64xf32>
    %44 = arith.maximumf %42, %43 : vector<8x64xf32>
    %c1_30 = arith.constant 1 : index
    %c0_31 = arith.constant 0 : index
    %c0_32 = arith.constant 0 : index
    %45 = vector.load %arg5[%c1_30, %c0_31, %c0_32] : memref<3x64x32xf32, #tpu.memory_space<vmem>>, vector<1x64x32xf32>
    %46 = vector.shape_cast %45 : vector<1x64x32xf32> to vector<64x32xf32>
    %cst_33 = arith.constant dense<0.000000e+00> : vector<8x32xf32>
    %47 = tpu.matmul %44, %46, %cst_33 {dimension_numbers = #tpu.dot_dimension_numbers<[1], [0], [0], [1], [0, 0, 1, 1], [], []>} : vector<8x64xf32>, vector<64x32xf32>, vector<8x32xf32> -> vector<8x32xf32>
    %c1_34 = arith.constant 1 : index
    %c0_35 = arith.constant 0 : index
    %c0_36 = arith.constant 0 : index
    %48 = vector.load %arg6[%c1_34, %c0_35, %c0_36] : memref<3x1x32xf32, #tpu.memory_space<vmem>>, vector<1x1x32xf32>
    %49 = vector.shape_cast %48 : vector<1x1x32xf32> to vector<1x32xf32>
    %50 = vector.broadcast %49 : vector<1x32xf32> to vector<8x32xf32>
    %51 = arith.addf %47, %50 : vector<8x32xf32>
    %cst_37 = arith.constant 0.000000e+00 : f32
    %52 = vector.broadcast %cst_37 : f32 to vector<8x32xf32>
    %53 = arith.maximumf %51, %52 : vector<8x32xf32>
    %54 = vector.extract_strided_slice %14 {offsets = [0, 1], sizes = [8, 1], strides = [1, 1]} : vector<8x3xf32> to vector<8x1xf32>
    %55 = vector.broadcast %54 : vector<8x1xf32> to vector<8x32xf32>
    %56 = arith.mulf %53, %55 : vector<8x32xf32>
    %57 = arith.addf %35, %56 : vector<8x32xf32>
    %c2 = arith.constant 2 : index
    %c0_38 = arith.constant 0 : index
    %c0_39 = arith.constant 0 : index
    %58 = vector.load %arg3[%c2, %c0_38, %c0_39] : memref<3x32x64xf32, #tpu.memory_space<vmem>>, vector<1x32x64xf32>
    %59 = vector.shape_cast %58 : vector<1x32x64xf32> to vector<32x64xf32>
    %cst_40 = arith.constant dense<0.000000e+00> : vector<8x64xf32>
    %60 = tpu.matmul %0, %59, %cst_40 {dimension_numbers = #tpu.dot_dimension_numbers<[1], [0], [0], [1], [0, 0, 1, 1], [], []>} : vector<8x32xf32>, vector<32x64xf32>, vector<8x64xf32> -> vector<8x64xf32>
    %c2_41 = arith.constant 2 : index
    %c0_42 = arith.constant 0 : index
    %c0_43 = arith.constant 0 : index
    %61 = vector.load %arg4[%c2_41, %c0_42, %c0_43] : memref<3x1x64xf32, #tpu.memory_space<vmem>>, vector<1x1x64xf32>
    %62 = vector.shape_cast %61 : vector<1x1x64xf32> to vector<1x64xf32>
    %63 = vector.broadcast %62 : vector<1x64xf32> to vector<8x64xf32>
    %64 = arith.addf %60, %63 : vector<8x64xf32>
    %cst_44 = arith.constant 0.000000e+00 : f32
    %65 = vector.broadcast %cst_44 : f32 to vector<8x64xf32>
    %66 = arith.maximumf %64, %65 : vector<8x64xf32>
    %c2_45 = arith.constant 2 : index
    %c0_46 = arith.constant 0 : index
    %c0_47 = arith.constant 0 : index
    %67 = vector.load %arg5[%c2_45, %c0_46, %c0_47] : memref<3x64x32xf32, #tpu.memory_space<vmem>>, vector<1x64x32xf32>
    %68 = vector.shape_cast %67 : vector<1x64x32xf32> to vector<64x32xf32>
    %cst_48 = arith.constant dense<0.000000e+00> : vector<8x32xf32>
    %69 = tpu.matmul %66, %68, %cst_48 {dimension_numbers = #tpu.dot_dimension_numbers<[1], [0], [0], [1], [0, 0, 1, 1], [], []>} : vector<8x64xf32>, vector<64x32xf32>, vector<8x32xf32> -> vector<8x32xf32>
    %c2_49 = arith.constant 2 : index
    %c0_50 = arith.constant 0 : index
    %c0_51 = arith.constant 0 : index
    %70 = vector.load %arg6[%c2_49, %c0_50, %c0_51] : memref<3x1x32xf32, #tpu.memory_space<vmem>>, vector<1x1x32xf32>
    %71 = vector.shape_cast %70 : vector<1x1x32xf32> to vector<1x32xf32>
    %72 = vector.broadcast %71 : vector<1x32xf32> to vector<8x32xf32>
    %73 = arith.addf %69, %72 : vector<8x32xf32>
    %cst_52 = arith.constant 0.000000e+00 : f32
    %74 = vector.broadcast %cst_52 : f32 to vector<8x32xf32>
    %75 = arith.maximumf %73, %74 : vector<8x32xf32>
    %76 = vector.extract_strided_slice %14 {offsets = [0, 2], sizes = [8, 1], strides = [1, 1]} : vector<8x3xf32> to vector<8x1xf32>
    %77 = vector.broadcast %76 : vector<8x1xf32> to vector<8x32xf32>
    %78 = arith.mulf %75, %77 : vector<8x32xf32>
    %79 = arith.addf %57, %78 : vector<8x32xf32>
    %c0_53 = arith.constant 0 : index
    %c0_54 = arith.constant 0 : index
    %80 = vector.load %arg9[%c0_53, %c0_54] : memref<32x16xf32, #tpu.memory_space<vmem>>, vector<32x16xf32>
    %cst_55 = arith.constant dense<0.000000e+00> : vector<8x16xf32>
    %81 = tpu.matmul %79, %80, %cst_55 {dimension_numbers = #tpu.dot_dimension_numbers<[1], [0], [0], [1], [0, 0, 1, 1], [], []>} : vector<8x32xf32>, vector<32x16xf32>, vector<8x16xf32> -> vector<8x16xf32>
    %c0_56 = arith.constant 0 : index
    %c0_57 = arith.constant 0 : index
    %82 = vector.load %arg10[%c0_56, %c0_57] : memref<1x16xf32, #tpu.memory_space<vmem>>, vector<1x16xf32>
    %83 = vector.broadcast %82 : vector<1x16xf32> to vector<8x16xf32>
    %84 = arith.addf %81, %83 : vector<8x16xf32>
    %cst_58 = arith.constant 0.000000e+00 : f32
    %85 = vector.broadcast %cst_58 : f32 to vector<8x16xf32>
    %86 = arith.maximumf %84, %85 : vector<8x16xf32>
    %c0_59 = arith.constant 0 : index
    %c0_60 = arith.constant 0 : index
    %87 = vector.load %arg11[%c0_59, %c0_60] : memref<16x8xf32, #tpu.memory_space<vmem>>, vector<16x8xf32>
    %cst_61 = arith.constant dense<0.000000e+00> : vector<8x8xf32>
    %88 = tpu.matmul %86, %87, %cst_61 {dimension_numbers = #tpu.dot_dimension_numbers<[1], [0], [0], [1], [0, 0, 1, 1], [], []>} : vector<8x16xf32>, vector<16x8xf32>, vector<8x8xf32> -> vector<8x8xf32>
    %c0_62 = arith.constant 0 : index
    %c0_63 = arith.constant 0 : index
    %89 = vector.load %arg12[%c0_62, %c0_63] : memref<1x8xf32, #tpu.memory_space<vmem>>, vector<1x8xf32>
    %90 = vector.broadcast %89 : vector<1x8xf32> to vector<8x8xf32>
    %91 = arith.addf %88, %90 : vector<8x8xf32>
    %cst_64 = arith.constant 0.000000e+00 : f32
    %92 = vector.broadcast %cst_64 : f32 to vector<8x8xf32>
    %93 = arith.maximumf %91, %92 : vector<8x8xf32>
    %c0_65 = arith.constant 0 : index
    %c0_66 = arith.constant 0 : index
    %94 = vector.load %arg2[%c0_65, %c0_66] : memref<8x32xf32, #tpu.memory_space<vmem>>, vector<8x32xf32>
    %c0_67 = arith.constant 0 : index
    %c0_68 = arith.constant 0 : index
    %95 = vector.load %arg17[%c0_67, %c0_68] : memref<32x3xf32, #tpu.memory_space<vmem>>, vector<32x3xf32>
    %cst_69 = arith.constant dense<0.000000e+00> : vector<8x3xf32>
    %96 = tpu.matmul %94, %95, %cst_69 {dimension_numbers = #tpu.dot_dimension_numbers<[1], [0], [0], [1], [0, 0, 1, 1], [], []>} : vector<8x32xf32>, vector<32x3xf32>, vector<8x3xf32> -> vector<8x3xf32>
    %c0_70 = arith.constant 0 : index
    %c0_71 = arith.constant 0 : index
    %97 = vector.load %arg18[%c0_70, %c0_71] : memref<1x3xf32, #tpu.memory_space<vmem>>, vector<1x3xf32>
    %98 = vector.broadcast %97 : vector<1x3xf32> to vector<8x3xf32>
    %99 = arith.addf %96, %98 : vector<8x3xf32>
    %cst_72 = arith.constant dense<0xFF800000> : vector<8xf32>
    %100 = vector.multi_reduction <maximumf>, %99, %cst_72 [1] : vector<8x3xf32> to vector<8xf32>
    %101 = vector.shape_cast %100 : vector<8xf32> to vector<8x1xf32>
    %102 = vector.broadcast %101 : vector<8x1xf32> to vector<8x3xf32>
    %103 = arith.subf %99, %102 : vector<8x3xf32>
    %104 = math.exp %103 : vector<8x3xf32>
    %cst_73 = arith.constant dense<0.000000e+00> : vector<8xf32>
    %105 = vector.multi_reduction <add>, %104, %cst_73 [1] : vector<8x3xf32> to vector<8xf32>
    %106 = vector.shape_cast %105 : vector<8xf32> to vector<8x1xf32>
    %107 = vector.broadcast %106 : vector<8x1xf32> to vector<8x3xf32>
    %108 = arith.divf %104, %107 : vector<8x3xf32>
    %c0_74 = arith.constant 0 : index
    %c0_75 = arith.constant 0 : index
    %c0_76 = arith.constant 0 : index
    %109 = vector.load %arg13[%c0_74, %c0_75, %c0_76] : memref<3x32x64xf32, #tpu.memory_space<vmem>>, vector<1x32x64xf32>
    %110 = vector.shape_cast %109 : vector<1x32x64xf32> to vector<32x64xf32>
    %cst_77 = arith.constant dense<0.000000e+00> : vector<8x64xf32>
    %111 = tpu.matmul %94, %110, %cst_77 {dimension_numbers = #tpu.dot_dimension_numbers<[1], [0], [0], [1], [0, 0, 1, 1], [], []>} : vector<8x32xf32>, vector<32x64xf32>, vector<8x64xf32> -> vector<8x64xf32>
    %c0_78 = arith.constant 0 : index
    %c0_79 = arith.constant 0 : index
    %c0_80 = arith.constant 0 : index
    %112 = vector.load %arg14[%c0_78, %c0_79, %c0_80] : memref<3x1x64xf32, #tpu.memory_space<vmem>>, vector<1x1x64xf32>
    %113 = vector.shape_cast %112 : vector<1x1x64xf32> to vector<1x64xf32>
    %114 = vector.broadcast %113 : vector<1x64xf32> to vector<8x64xf32>
    %115 = arith.addf %111, %114 : vector<8x64xf32>
    %cst_81 = arith.constant 0.000000e+00 : f32
    %116 = vector.broadcast %cst_81 : f32 to vector<8x64xf32>
    %117 = arith.maximumf %115, %116 : vector<8x64xf32>
    %c0_82 = arith.constant 0 : index
    %c0_83 = arith.constant 0 : index
    %c0_84 = arith.constant 0 : index
    %118 = vector.load %arg15[%c0_82, %c0_83, %c0_84] : memref<3x64x32xf32, #tpu.memory_space<vmem>>, vector<1x64x32xf32>
    %119 = vector.shape_cast %118 : vector<1x64x32xf32> to vector<64x32xf32>
    %cst_85 = arith.constant dense<0.000000e+00> : vector<8x32xf32>
    %120 = tpu.matmul %117, %119, %cst_85 {dimension_numbers = #tpu.dot_dimension_numbers<[1], [0], [0], [1], [0, 0, 1, 1], [], []>} : vector<8x64xf32>, vector<64x32xf32>, vector<8x32xf32> -> vector<8x32xf32>
    %c0_86 = arith.constant 0 : index
    %c0_87 = arith.constant 0 : index
    %c0_88 = arith.constant 0 : index
    %121 = vector.load %arg16[%c0_86, %c0_87, %c0_88] : memref<3x1x32xf32, #tpu.memory_space<vmem>>, vector<1x1x32xf32>
    %122 = vector.shape_cast %121 : vector<1x1x32xf32> to vector<1x32xf32>
    %123 = vector.broadcast %122 : vector<1x32xf32> to vector<8x32xf32>
    %124 = arith.addf %120, %123 : vector<8x32xf32>
    %cst_89 = arith.constant 0.000000e+00 : f32
    %125 = vector.broadcast %cst_89 : f32 to vector<8x32xf32>
    %126 = arith.maximumf %124, %125 : vector<8x32xf32>
    %127 = vector.extract_strided_slice %108 {offsets = [0, 0], sizes = [8, 1], strides = [1, 1]} : vector<8x3xf32> to vector<8x1xf32>
    %128 = vector.broadcast %127 : vector<8x1xf32> to vector<8x32xf32>
    %129 = arith.mulf %126, %128 : vector<8x32xf32>
    %c1_90 = arith.constant 1 : index
    %c0_91 = arith.constant 0 : index
    %c0_92 = arith.constant 0 : index
    %130 = vector.load %arg13[%c1_90, %c0_91, %c0_92] : memref<3x32x64xf32, #tpu.memory_space<vmem>>, vector<1x32x64xf32>
    %131 = vector.shape_cast %130 : vector<1x32x64xf32> to vector<32x64xf32>
    %cst_93 = arith.constant dense<0.000000e+00> : vector<8x64xf32>
    %132 = tpu.matmul %94, %131, %cst_93 {dimension_numbers = #tpu.dot_dimension_numbers<[1], [0], [0], [1], [0, 0, 1, 1], [], []>} : vector<8x32xf32>, vector<32x64xf32>, vector<8x64xf32> -> vector<8x64xf32>
    %c1_94 = arith.constant 1 : index
    %c0_95 = arith.constant 0 : index
    %c0_96 = arith.constant 0 : index
    %133 = vector.load %arg14[%c1_94, %c0_95, %c0_96] : memref<3x1x64xf32, #tpu.memory_space<vmem>>, vector<1x1x64xf32>
    %134 = vector.shape_cast %133 : vector<1x1x64xf32> to vector<1x64xf32>
    %135 = vector.broadcast %134 : vector<1x64xf32> to vector<8x64xf32>
    %136 = arith.addf %132, %135 : vector<8x64xf32>
    %cst_97 = arith.constant 0.000000e+00 : f32
    %137 = vector.broadcast %cst_97 : f32 to vector<8x64xf32>
    %138 = arith.maximumf %136, %137 : vector<8x64xf32>
    %c1_98 = arith.constant 1 : index
    %c0_99 = arith.constant 0 : index
    %c0_100 = arith.constant 0 : index
    %139 = vector.load %arg15[%c1_98, %c0_99, %c0_100] : memref<3x64x32xf32, #tpu.memory_space<vmem>>, vector<1x64x32xf32>
    %140 = vector.shape_cast %139 : vector<1x64x32xf32> to vector<64x32xf32>
    %cst_101 = arith.constant dense<0.000000e+00> : vector<8x32xf32>
    %141 = tpu.matmul %138, %140, %cst_101 {dimension_numbers = #tpu.dot_dimension_numbers<[1], [0], [0], [1], [0, 0, 1, 1], [], []>} : vector<8x64xf32>, vector<64x32xf32>, vector<8x32xf32> -> vector<8x32xf32>
    %c1_102 = arith.constant 1 : index
    %c0_103 = arith.constant 0 : index
    %c0_104 = arith.constant 0 : index
    %142 = vector.load %arg16[%c1_102, %c0_103, %c0_104] : memref<3x1x32xf32, #tpu.memory_space<vmem>>, vector<1x1x32xf32>
    %143 = vector.shape_cast %142 : vector<1x1x32xf32> to vector<1x32xf32>
    %144 = vector.broadcast %143 : vector<1x32xf32> to vector<8x32xf32>
    %145 = arith.addf %141, %144 : vector<8x32xf32>
    %cst_105 = arith.constant 0.000000e+00 : f32
    %146 = vector.broadcast %cst_105 : f32 to vector<8x32xf32>
    %147 = arith.maximumf %145, %146 : vector<8x32xf32>
    %148 = vector.extract_strided_slice %108 {offsets = [0, 1], sizes = [8, 1], strides = [1, 1]} : vector<8x3xf32> to vector<8x1xf32>
    %149 = vector.broadcast %148 : vector<8x1xf32> to vector<8x32xf32>
    %150 = arith.mulf %147, %149 : vector<8x32xf32>
    %151 = arith.addf %129, %150 : vector<8x32xf32>
    %c2_106 = arith.constant 2 : index
    %c0_107 = arith.constant 0 : index
    %c0_108 = arith.constant 0 : index
    %152 = vector.load %arg13[%c2_106, %c0_107, %c0_108] : memref<3x32x64xf32, #tpu.memory_space<vmem>>, vector<1x32x64xf32>
    %153 = vector.shape_cast %152 : vector<1x32x64xf32> to vector<32x64xf32>
    %cst_109 = arith.constant dense<0.000000e+00> : vector<8x64xf32>
    %154 = tpu.matmul %94, %153, %cst_109 {dimension_numbers = #tpu.dot_dimension_numbers<[1], [0], [0], [1], [0, 0, 1, 1], [], []>} : vector<8x32xf32>, vector<32x64xf32>, vector<8x64xf32> -> vector<8x64xf32>
    %c2_110 = arith.constant 2 : index
    %c0_111 = arith.constant 0 : index
    %c0_112 = arith.constant 0 : index
    %155 = vector.load %arg14[%c2_110, %c0_111, %c0_112] : memref<3x1x64xf32, #tpu.memory_space<vmem>>, vector<1x1x64xf32>
    %156 = vector.shape_cast %155 : vector<1x1x64xf32> to vector<1x64xf32>
    %157 = vector.broadcast %156 : vector<1x64xf32> to vector<8x64xf32>
    %158 = arith.addf %154, %157 : vector<8x64xf32>
    %cst_113 = arith.constant 0.000000e+00 : f32
    %159 = vector.broadcast %cst_113 : f32 to vector<8x64xf32>
    %160 = arith.maximumf %158, %159 : vector<8x64xf32>
    %c2_114 = arith.constant 2 : index
    %c0_115 = arith.constant 0 : index
    %c0_116 = arith.constant 0 : index
    %161 = vector.load %arg15[%c2_114, %c0_115, %c0_116] : memref<3x64x32xf32, #tpu.memory_space<vmem>>, vector<1x64x32xf32>
    %162 = vector.shape_cast %161 : vector<1x64x32xf32> to vector<64x32xf32>
    %cst_117 = arith.constant dense<0.000000e+00> : vector<8x32xf32>
    %163 = tpu.matmul %160, %162, %cst_117 {dimension_numbers = #tpu.dot_dimension_numbers<[1], [0], [0], [1], [0, 0, 1, 1], [], []>} : vector<8x64xf32>, vector<64x32xf32>, vector<8x32xf32> -> vector<8x32xf32>
    %c2_118 = arith.constant 2 : index
    %c0_119 = arith.constant 0 : index
    %c0_120 = arith.constant 0 : index
    %164 = vector.load %arg16[%c2_118, %c0_119, %c0_120] : memref<3x1x32xf32, #tpu.memory_space<vmem>>, vector<1x1x32xf32>
    %165 = vector.shape_cast %164 : vector<1x1x32xf32> to vector<1x32xf32>
    %166 = vector.broadcast %165 : vector<1x32xf32> to vector<8x32xf32>
    %167 = arith.addf %163, %166 : vector<8x32xf32>
    %cst_121 = arith.constant 0.000000e+00 : f32
    %168 = vector.broadcast %cst_121 : f32 to vector<8x32xf32>
    %169 = arith.maximumf %167, %168 : vector<8x32xf32>
    %170 = vector.extract_strided_slice %108 {offsets = [0, 2], sizes = [8, 1], strides = [1, 1]} : vector<8x3xf32> to vector<8x1xf32>
    %171 = vector.broadcast %170 : vector<8x1xf32> to vector<8x32xf32>
    %172 = arith.mulf %169, %171 : vector<8x32xf32>
    %173 = arith.addf %151, %172 : vector<8x32xf32>
    %c0_122 = arith.constant 0 : index
    %c0_123 = arith.constant 0 : index
    %174 = vector.load %arg19[%c0_122, %c0_123] : memref<32x16xf32, #tpu.memory_space<vmem>>, vector<32x16xf32>
    %cst_124 = arith.constant dense<0.000000e+00> : vector<8x16xf32>
    %175 = tpu.matmul %173, %174, %cst_124 {dimension_numbers = #tpu.dot_dimension_numbers<[1], [0], [0], [1], [0, 0, 1, 1], [], []>} : vector<8x32xf32>, vector<32x16xf32>, vector<8x16xf32> -> vector<8x16xf32>
    %c0_125 = arith.constant 0 : index
    %c0_126 = arith.constant 0 : index
    %176 = vector.load %arg20[%c0_125, %c0_126] : memref<1x16xf32, #tpu.memory_space<vmem>>, vector<1x16xf32>
    %177 = vector.broadcast %176 : vector<1x16xf32> to vector<8x16xf32>
    %178 = arith.addf %175, %177 : vector<8x16xf32>
    %cst_127 = arith.constant 0.000000e+00 : f32
    %179 = vector.broadcast %cst_127 : f32 to vector<8x16xf32>
    %180 = arith.maximumf %178, %179 : vector<8x16xf32>
    %c0_128 = arith.constant 0 : index
    %c0_129 = arith.constant 0 : index
    %181 = vector.load %arg21[%c0_128, %c0_129] : memref<16x8xf32, #tpu.memory_space<vmem>>, vector<16x8xf32>
    %cst_130 = arith.constant dense<0.000000e+00> : vector<8x8xf32>
    %182 = tpu.matmul %180, %181, %cst_130 {dimension_numbers = #tpu.dot_dimension_numbers<[1], [0], [0], [1], [0, 0, 1, 1], [], []>} : vector<8x16xf32>, vector<16x8xf32>, vector<8x8xf32> -> vector<8x8xf32>
    %c0_131 = arith.constant 0 : index
    %c0_132 = arith.constant 0 : index
    %183 = vector.load %arg22[%c0_131, %c0_132] : memref<1x8xf32, #tpu.memory_space<vmem>>, vector<1x8xf32>
    %184 = vector.broadcast %183 : vector<1x8xf32> to vector<8x8xf32>
    %185 = arith.addf %182, %184 : vector<8x8xf32>
    %cst_133 = arith.constant 0.000000e+00 : f32
    %186 = vector.broadcast %cst_133 : f32 to vector<8x8xf32>
    %187 = arith.maximumf %185, %186 : vector<8x8xf32>
    %188 = arith.mulf %93, %187 : vector<8x8xf32>
    %cst_134 = arith.constant dense<0.000000e+00> : vector<8xf32>
    %189 = vector.multi_reduction <add>, %188, %cst_134 [1] : vector<8x8xf32> to vector<8xf32>
    %190 = vector.shape_cast %189 : vector<8xf32> to vector<8x1xf32>
    %191 = tpu.iota {dimensions = array<i32: 1>} : vector<8x128xi32>
    %c0_i32 = arith.constant 0 : i32
    %192 = vector.broadcast %c0_i32 : i32 to vector<8x128xi32>
    %193 = arith.cmpi eq, %191, %192 : vector<8x128xi32>
    %cst_135 = arith.constant 0.000000e+00 : f32
    %194 = vector.shape_cast %190 : vector<8x1xf32> to vector<8x1xf32>
    %195 = vector.broadcast %194 : vector<8x1xf32> to vector<8x128xf32>
    %196 = vector.broadcast %cst_135 : f32 to vector<8x128xf32>
    %197 = arith.select %193, %195, %196 : vector<8x128xi1>, vector<8x128xf32>
    %c0_136 = arith.constant 0 : index
    %c0_137 = arith.constant 0 : index
    %198 = vector.load %arg23[%c0_136, %c0_137] : memref<8x128xf32, #tpu.memory_space<vmem>>, vector<8x128xf32>
    tpu.vector_store %arg23[%c0_136, %c0_137], %197 {strides = array<i32>} : memref<8x128xf32, #tpu.memory_space<vmem>>, vector<8x128xf32>,
    return
  }
  func.func @transform_0(%arg0: i32) -> (i32, i32) {
    %c0_i32 = arith.constant 0 : i32
    %c0_i32_0 = arith.constant 0 : i32
    return %arg0, %c0_i32 : i32, i32
  }
  func.func @transform_1(%arg0: i32) -> (i32, i32) {
    %c0_i32 = arith.constant 0 : i32
    %c0_i32_0 = arith.constant 0 : i32
    return %arg0, %c0_i32 : i32, i32
  }
  func.func @transform_2(%arg0: i32) -> (i32, i32, i32) {
    %c0_i32 = arith.constant 0 : i32
    %c0_i32_0 = arith.constant 0 : i32
    %c0_i32_1 = arith.constant 0 : i32
    %c0_i32_2 = arith.constant 0 : i32
    return %c0_i32, %c0_i32_0, %c0_i32_1 : i32, i32, i32
  }
  func.func @transform_3(%arg0: i32) -> (i32, i32, i32) {
    %c0_i32 = arith.constant 0 : i32
    %c0_i32_0 = arith.constant 0 : i32
    %c0_i32_1 = arith.constant 0 : i32
    %c0_i32_2 = arith.constant 0 : i32
    return %c0_i32, %c0_i32_0, %c0_i32_1 : i32, i32, i32
  }
  func.func @transform_4(%arg0: i32) -> (i32, i32, i32) {
    %c0_i32 = arith.constant 0 : i32
    %c0_i32_0 = arith.constant 0 : i32
    %c0_i32_1 = arith.constant 0 : i32
    %c0_i32_2 = arith.constant 0 : i32
    return %c0_i32, %c0_i32_0, %c0_i32_1 : i32, i32, i32
  }
  func.func @transform_5(%arg0: i32) -> (i32, i32, i32) {
    %c0_i32 = arith.constant 0 : i32
    %c0_i32_0 = arith.constant 0 : i32
    %c0_i32_1 = arith.constant 0 : i32
    %c0_i32_2 = arith.constant 0 : i32
    return %c0_i32, %c0_i32_0, %c0_i32_1 : i32, i32, i32
  }
  func.func @transform_6(%arg0: i32) -> (i32, i32) {
    %c0_i32 = arith.constant 0 : i32
    %c0_i32_0 = arith.constant 0 : i32
    %c0_i32_1 = arith.constant 0 : i32
    return %c0_i32, %c0_i32_0 : i32, i32
  }
  func.func @transform_7(%arg0: i32) -> (i32, i32) {
    %c0_i32 = arith.constant 0 : i32
    %c0_i32_0 = arith.constant 0 : i32
    %c0_i32_1 = arith.constant 0 : i32
    return %c0_i32, %c0_i32_0 : i32, i32
  }
  func.func @transform_8(%arg0: i32) -> (i32, i32) {
    %c0_i32 = arith.constant 0 : i32
    %c0_i32_0 = arith.constant 0 : i32
    %c0_i32_1 = arith.constant 0 : i32
    return %c0_i32, %c0_i32_0 : i32, i32
  }
  func.func @transform_9(%arg0: i32) -> (i32, i32) {
    %c0_i32 = arith.constant 0 : i32
    %c0_i32_0 = arith.constant 0 : i32
    %c0_i32_1 = arith.constant 0 : i32
    return %c0_i32, %c0_i32_0 : i32, i32
  }
  func.func @transform_10(%arg0: i32) -> (i32, i32) {
    %c0_i32 = arith.constant 0 : i32
    %c0_i32_0 = arith.constant 0 : i32
    %c0_i32_1 = arith.constant 0 : i32
    return %c0_i32, %c0_i32_0 : i32, i32
  }
  func.func @transform_11(%arg0: i32) -> (i32, i32) {
    %c0_i32 = arith.constant 0 : i32
    %c0_i32_0 = arith.constant 0 : i32
    %c0_i32_1 = arith.constant 0 : i32
    return %c0_i32, %c0_i32_0 : i32, i32
  }
  func.func @transform_12(%arg0: i32) -> (i32, i32, i32) {
    %c0_i32 = arith.constant 0 : i32
    %c0_i32_0 = arith.constant 0 : i32
    %c0_i32_1 = arith.constant 0 : i32
    %c0_i32_2 = arith.constant 0 : i32
    return %c0_i32, %c0_i32_0, %c0_i32_1 : i32, i32, i32
  }
  func.func @transform_13(%arg0: i32) -> (i32, i32, i32) {
    %c0_i32 = arith.constant 0 : i32
    %c0_i32_0 = arith.constant 0 : i32
    %c0_i32_1 = arith.constant 0 : i32
    %c0_i32_2 = arith.constant 0 : i32
    return %c0_i32, %c0_i32_0, %c0_i32_1 : i32, i32, i32
  }
  func.func @transform_14(%arg0: i32) -> (i32, i32, i32) {
    %c0_i32 = arith.constant 0 : i32
    %c0_i32_0 = arith.constant 0 : i32
    %c0_i32_1 = arith.constant 0 : i32
    %c0_i32_2 = arith.constant 0 : i32
    return %c0_i32, %c0_i32_0, %c0_i32_1 : i32, i32, i32
  }
  func.func @transform_15(%arg0: i32) -> (i32, i32, i32) {
    %c0_i32 = arith.constant 0 : i32
    %c0_i32_0 = arith.constant 0 : i32
    %c0_i32_1 = arith.constant 0 : i32
    %c0_i32_2 = arith.constant 0 : i32
    return %c0_i32, %c0_i32_0, %c0_i32_1 : i32, i32, i32
  }
  func.func @transform_16(%arg0: i32) -> (i32, i32) {
    %c0_i32 = arith.constant 0 : i32
    %c0_i32_0 = arith.constant 0 : i32
    %c0_i32_1 = arith.constant 0 : i32
    return %c0_i32, %c0_i32_0 : i32, i32
  }
  func.func @transform_17(%arg0: i32) -> (i32, i32) {
    %c0_i32 = arith.constant 0 : i32
    %c0_i32_0 = arith.constant 0 : i32
    %c0_i32_1 = arith.constant 0 : i32
    return %c0_i32, %c0_i32_0 : i32, i32
  }
  func.func @transform_18(%arg0: i32) -> (i32, i32) {
    %c0_i32 = arith.constant 0 : i32
    %c0_i32_0 = arith.constant 0 : i32
    %c0_i32_1 = arith.constant 0 : i32
    return %c0_i32, %c0_i32_0 : i32, i32
  }
  func.func @transform_19(%arg0: i32) -> (i32, i32) {
    %c0_i32 = arith.constant 0 : i32
    %c0_i32_0 = arith.constant 0 : i32
    %c0_i32_1 = arith.constant 0 : i32
    return %c0_i32, %c0_i32_0 : i32, i32
  }
  func.func @transform_20(%arg0: i32) -> (i32, i32) {
    %c0_i32 = arith.constant 0 : i32
    %c0_i32_0 = arith.constant 0 : i32
    %c0_i32_1 = arith.constant 0 : i32
    return %c0_i32, %c0_i32_0 : i32, i32
  }
  func.func @transform_21(%arg0: i32) -> (i32, i32) {
    %c0_i32 = arith.constant 0 : i32
    %c0_i32_0 = arith.constant 0 : i32
    %c0_i32_1 = arith.constant 0 : i32
    return %c0_i32, %c0_i32_0 : i32, i32
  }
  func.func @transform_22(%arg0: i32) -> (i32, i32) {
    %c0_i32 = arith.constant 0 : i32
    %c0_i32_0 = arith.constant 0 : i32
    return %arg0, %c0_i32 : i32, i32
  }
}

</mosaic_0001>

<llo_original>
// kernel: tpu_custom_call.1
$region0: #{tpu_custom_call.1}
  #allocation0 [shape = 'u32[]', space=smem, size = 0x4, offset = 0x4, fixed_abs, tag = 'smem constant byte address 0x4 - core index']
  #allocation1 [shape = 'u32[144,128]{1,0:T(1,128)}', space=vmem, size = 0x12000, scoped, tag = 'internal scratch']
  %s0 = inlined_call_operand.vmem [shape: f32[8,32], index: 0, kind: input, shape index: {}]
  %s1 = inlined_call_operand.vmem [shape: f32[8,32], index: 1, kind: input, shape index: {}]
  %s2 = inlined_call_operand.vmem [shape: f32[3,32,64], index: 2, kind: input, shape index: {}]
  %s3 = inlined_call_operand.vmem [shape: f32[3,1,64], index: 3, kind: input, shape index: {}]
  %s4 = inlined_call_operand.vmem [shape: f32[3,64,32], index: 4, kind: input, shape index: {}]
  %s5 = inlined_call_operand.vmem [shape: f32[3,1,32], index: 5, kind: input, shape index: {}]
  %s6 = inlined_call_operand.vmem [shape: f32[32,3], index: 6, kind: input, shape index: {}]
  %s7 = inlined_call_operand.vmem [shape: f32[1,3], index: 7, kind: input, shape index: {}]
  %s8 = inlined_call_operand.vmem [shape: f32[32,16], index: 8, kind: input, shape index: {}]
  %s9 = inlined_call_operand.vmem [shape: f32[1,16], index: 9, kind: input, shape index: {}]
  %s10 = inlined_call_operand.vmem [shape: f32[16,8], index: 10, kind: input, shape index: {}]
  %s11 = inlined_call_operand.vmem [shape: f32[1,8], index: 11, kind: input, shape index: {}]
  %s12 = inlined_call_operand.vmem [shape: f32[3,32,64], index: 12, kind: input, shape index: {}]
  %s13 = inlined_call_operand.vmem [shape: f32[3,1,64], index: 13, kind: input, shape index: {}]
  %s14 = inlined_call_operand.vmem [shape: f32[3,64,32], index: 14, kind: input, shape index: {}]
  %s15 = inlined_call_operand.vmem [shape: f32[3,1,32], index: 15, kind: input, shape index: {}]
  %s16 = inlined_call_operand.vmem [shape: f32[32,3], index: 16, kind: input, shape index: {}]
  %s17 = inlined_call_operand.vmem [shape: f32[1,3], index: 17, kind: input, shape index: {}]
  %s18 = inlined_call_operand.vmem [shape: f32[32,16], index: 18, kind: input, shape index: {}]
  %s19 = inlined_call_operand.vmem [shape: f32[1,16], index: 19, kind: input, shape index: {}]
  %s20 = inlined_call_operand.vmem [shape: f32[16,8], index: 20, kind: input, shape index: {}]
  %s21 = inlined_call_operand.vmem [shape: f32[1,8], index: 21, kind: input, shape index: {}]
  %s22 = inlined_call_operand.hbm [shape: f32[8,128], index: 22, kind: output, shape index: {}]
  %s23 = sld [smem:[#allocation0]]
  $region98: #{tpu_custom_call.1} parent=0
    _
  %s25 = ssub.s32 1, %s23
  %s26 = scalar_select 0, %s25, %s23
  $region1: #{tpu_custom_call.1} parent=0
    #allocation2 [shape = 'u8[4096]{0}', space=vmem, size = 0x1000, scoped, tag = 'output window, operand 0, single buffered']
    #allocation3 [shape = 's32[1]{0}', space=sflag, size = 0x4, scoped, tag = 'scoped memory for tpu_custom_call.1']
    %27 = vsyncpa [#allocation3], 0
    // Predicated region
    $region2: #{tpu_custom_call.1} parent=1 // pred_check
      _
    $region3: #{tpu_custom_call.1} parent=1 // pred_check_branch
      %29 = sbr.rel (0) target = $region5
    $region4: #{tpu_custom_call.1} parent=1 // pred_region
      _
    $region5: #{tpu_custom_call.1} parent=1 // pred_fallthru
      _
    // Predicated region
    $region6: #{tpu_custom_call.1} parent=1 // pred_check
      _
    $region7: #{tpu_custom_call.1} parent=1 // pred_check_branch
      %31 = sbr.rel (0) target = $region9
    $region8: #{tpu_custom_call.1} parent=1 // pred_region
      _
    $region9: #{tpu_custom_call.1} parent=1 // pred_fallthru
      _
    // Predicated region
    $region10: #{tpu_custom_call.1} parent=1 // pred_check
      _
    $region11: #{tpu_custom_call.1} parent=1 // pred_check_branch
      %33 = sbr.rel (0) target = $region13
    $region12: #{tpu_custom_call.1} parent=1 // pred_region
      _
    $region13: #{tpu_custom_call.1} parent=1 // pred_fallthru
      _
    // Predicated region
    $region14: #{tpu_custom_call.1} parent=1 // pred_check
      _
    $region15: #{tpu_custom_call.1} parent=1 // pred_check_branch
      %35 = sbr.rel (0) target = $region17
    $region16: #{tpu_custom_call.1} parent=1 // pred_region
      _
    $region17: #{tpu_custom_call.1} parent=1 // pred_fallthru
      _
    // Predicated region
    $region18: #{tpu_custom_call.1} parent=1 // pred_check
      _
    $region19: #{tpu_custom_call.1} parent=1 // pred_check_branch
      %37 = sbr.rel (0) target = $region21
    $region20: #{tpu_custom_call.1} parent=1 // pred_region
      _
    $region21: #{tpu_custom_call.1} parent=1 // pred_fallthru
      _
    // Predicated region
    $region22: #{tpu_custom_call.1} parent=1 // pred_check
      _
    $region23: #{tpu_custom_call.1} parent=1 // pred_check_branch
      %39 = sbr.rel (0) target = $region25
    $region24: #{tpu_custom_call.1} parent=1 // pred_region
      _
    $region25: #{tpu_custom_call.1} parent=1 // pred_fallthru
      _
    // Predicated region
    $region26: #{tpu_custom_call.1} parent=1 // pred_check
      _
    $region27: #{tpu_custom_call.1} parent=1 // pred_check_branch
      %41 = sbr.rel (0) target = $region29
    $region28: #{tpu_custom_call.1} parent=1 // pred_region
      _
    $region29: #{tpu_custom_call.1} parent=1 // pred_fallthru
      _
    // Predicated region
    $region30: #{tpu_custom_call.1} parent=1 // pred_check
      _
    $region31: #{tpu_custom_call.1} parent=1 // pred_check_branch
      %43 = sbr.rel (0) target = $region33
    $region32: #{tpu_custom_call.1} parent=1 // pred_region
      _
    $region33: #{tpu_custom_call.1} parent=1 // pred_fallthru
      _
    // Predicated region
    $region34: #{tpu_custom_call.1} parent=1 // pred_check
      _
    $region35: #{tpu_custom_call.1} parent=1 // pred_check_branch
      %45 = sbr.rel (0) target = $region37
    $region36: #{tpu_custom_call.1} parent=1 // pred_region
      _
    $region37: #{tpu_custom_call.1} parent=1 // pred_fallthru
      _
    // Predicated region
    $region38: #{tpu_custom_call.1} parent=1 // pred_check
      _
    $region39: #{tpu_custom_call.1} parent=1 // pred_check_branch
      %47 = sbr.rel (0) target = $region41
    $region40: #{tpu_custom_call.1} parent=1 // pred_region
      _
    $region41: #{tpu_custom_call.1} parent=1 // pred_fallthru
      _
    // Predicated region
    $region42: #{tpu_custom_call.1} parent=1 // pred_check
      _
    $region43: #{tpu_custom_call.1} parent=1 // pred_check_branch
      %49 = sbr.rel (0) target = $region45
    $region44: #{tpu_custom_call.1} parent=1 // pred_region
      _
    $region45: #{tpu_custom_call.1} parent=1 // pred_fallthru
      _
    // Predicated region
    $region46: #{tpu_custom_call.1} parent=1 // pred_check
      _
    $region47: #{tpu_custom_call.1} parent=1 // pred_check_branch
      %51 = sbr.rel (0) target = $region49
    $region48: #{tpu_custom_call.1} parent=1 // pred_region
      _
    $region49: #{tpu_custom_call.1} parent=1 // pred_fallthru
      _
    // Predicated region
    $region50: #{tpu_custom_call.1} parent=1 // pred_check
      _
    $region51: #{tpu_custom_call.1} parent=1 // pred_check_branch
      %53 = sbr.rel (0) target = $region53
    $region52: #{tpu_custom_call.1} parent=1 // pred_region
      _
    $region53: #{tpu_custom_call.1} parent=1 // pred_fallthru
      _
    // Predicated region
    $region54: #{tpu_custom_call.1} parent=1 // pred_check
      _
    $region55: #{tpu_custom_call.1} parent=1 // pred_check_branch
      %55 = sbr.rel (0) target = $region57
    $region56: #{tpu_custom_call.1} parent=1 // pred_region
      _
    $region57: #{tpu_custom_call.1} parent=1 // pred_fallthru
      _
    // Predicated region
    $region58: #{tpu_custom_call.1} parent=1 // pred_check
      _
    $region59: #{tpu_custom_call.1} parent=1 // pred_check_branch
      %57 = sbr.rel (0) target = $region61
    $region60: #{tpu_custom_call.1} parent=1 // pred_region
      _
    $region61: #{tpu_custom_call.1} parent=1 // pred_fallthru
      _
    // Predicated region
    $region62: #{tpu_custom_call.1} parent=1 // pred_check
      _
    $region63: #{tpu_custom_call.1} parent=1 // pred_check_branch
      %59 = sbr.rel (0) target = $region65
    $region64: #{tpu_custom_call.1} parent=1 // pred_region
      _
    $region65: #{tpu_custom_call.1} parent=1 // pred_fallthru
      _
    // Predicated region
    $region66: #{tpu_custom_call.1} parent=1 // pred_check
      _
    $region67: #{tpu_custom_call.1} parent=1 // pred_check_branch
      %61 = sbr.rel (0) target = $region69
    $region68: #{tpu_custom_call.1} parent=1 // pred_region
      _
    $region69: #{tpu_custom_call.1} parent=1 // pred_fallthru
      _
    // Predicated region
    $region70: #{tpu_custom_call.1} parent=1 // pred_check
      _
    $region71: #{tpu_custom_call.1} parent=1 // pred_check_branch
      %63 = sbr.rel (0) target = $region73
    $region72: #{tpu_custom_call.1} parent=1 // pred_region
      _
    $region73: #{tpu_custom_call.1} parent=1 // pred_fallthru
      _
    // Predicated region
    $region74: #{tpu_custom_call.1} parent=1 // pred_check
      _
    $region75: #{tpu_custom_call.1} parent=1 // pred_check_branch
      %65 = sbr.rel (0) target = $region77
    $region76: #{tpu_custom_call.1} parent=1 // pred_region
      _
    $region77: #{tpu_custom_call.1} parent=1 // pred_fallthru
      _
    // Predicated region
    $region78: #{tpu_custom_call.1} parent=1 // pred_check
      _
    $region79: #{tpu_custom_call.1} parent=1 // pred_check_branch
      %67 = sbr.rel (0) target = $region81
    $region80: #{tpu_custom_call.1} parent=1 // pred_region
      _
    $region81: #{tpu_custom_call.1} parent=1 // pred_fallthru
      _
    // Predicated region
    $region82: #{tpu_custom_call.1} parent=1 // pred_check
      _
    $region83: #{tpu_custom_call.1} parent=1 // pred_check_branch
      %69 = sbr.rel (0) target = $region85
    $region84: #{tpu_custom_call.1} parent=1 // pred_region
      _
    $region85: #{tpu_custom_call.1} parent=1 // pred_fallthru
      _
    // Predicated region
    $region86: #{tpu_custom_call.1} parent=1 // pred_check
      _
    $region87: #{tpu_custom_call.1} parent=1 // pred_check_branch
      %71 = sbr.rel (0) target = $region89
    $region88: #{tpu_custom_call.1} parent=1 // pred_region
      _
    $region89: #{tpu_custom_call.1} parent=1 // pred_fallthru
      _
    %v72 = vld [vmem:[%s0] sm:$0xff]
    %v73 = vld [vmem:[%s6] sm:$0xff]
    %v74 = vld [vmem:[%s6 + $0x8] sm:$0xff]
    %v75 = vld [vmem:[%s6 + $0x10] sm:$0xff]
    %v76 = vld [vmem:[%s6 + $0x18] sm:$0xff]
    %v77 = vld [vmem:[%s7] sm:$0x1]
    %v79 = vlaneseq
    %v80 = vshrl.u32 %v79, 7
    %v81 = vsub.s32 0, %v80
    %v82 = vrot.slane %v77, %v81
    %vm84 = vcmask 261120
    %v86 = vsel %vm84, %v72, 0
    %88 = vmatprep.subr.mxu0 0.0
    %89 = vmatpush1.msra.mxu0 0.0
    %90 = vmatprep.subr.mxu0 0.0
    %91 = vmatpush1.msra.mxu0 0.0
    %92 = vmatprep.subr.mxu0 0.0
    %93 = vmatpush1.msra.mxu0 0.0
    %94 = vmatprep.subr.mxu0 0.0
    %95 = vmatpush1.msra.mxu0 0.0
    %96 = vmatprep.subr.mxu0 0.0
    %97 = vmatpush1.msra.mxu0 0.0
    %98 = vmatprep.subr.mxu0 0.0
    %99 = vmatpush1.msra.mxu0 0.0
    %100 = vmatprep.subr.mxu0 0.0
    %101 = vmatpush1.msra.mxu0 0.0
    %102 = vmatprep.subr.mxu0 0.0
    %103 = vmatpush1.msra.mxu0 0.0
    %104 = vmatprep.subr.mxu0 0.0
    %105 = vmatpush1.msra.mxu0 0.0
    %106 = vmatprep.subr.mxu0 0.0
    %107 = vmatpush1.msra.mxu0 0.0
    %108 = vmatprep.subr.mxu0 0.0
    %109 = vmatpush1.msra.mxu0 0.0
    %110 = vmatprep.subr.mxu0 0.0
    %111 = vmatpush1.msra.mxu0 0.0
    %112 = vmatprep.subr.mxu0 0.0
    %113 = vmatpush1.msra.mxu0 %v76
    %114 = vmatprep.subr.mxu0 0.0
    %115 = vmatpush1.msra.mxu0 %v75
    %116 = vmatprep.subr.mxu0 0.0
    %117 = vmatpush1.msra.mxu0 %v74
    %118 = vmatprep.subr.mxu0 0.0
    %119 = vmatpush1.msra.mxu0 %v73
    %120 = vmatprep.subr.mxu0 0.0
    %121 = vmatpush2.msra.mxu0 0.0
    %122 = vmatprep.subr.mxu0 0.0
    %123 = vmatpush2.msra.mxu0 0.0
    %124 = vmatprep.subr.mxu0 0.0
    %125 = vmatpush2.msra.mxu0 0.0
    %126 = vmatprep.subr.mxu0 0.0
    %127 = vmatpush2.msra.mxu0 0.0
    %128 = vmatprep.subr.mxu0 0.0
    %129 = vmatpush2.msra.mxu0 0.0
    %130 = vmatprep.subr.mxu0 0.0
    %131 = vmatpush2.msra.mxu0 0.0
    %132 = vmatprep.subr.mxu0 0.0
    %133 = vmatpush2.msra.mxu0 0.0
    %134 = vmatprep.subr.mxu0 0.0
    %135 = vmatpush2.msra.mxu0 0.0
    %136 = vmatprep.subr.mxu0 0.0
    %137 = vmatpush2.msra.mxu0 0.0
    %138 = vmatprep.subr.mxu0 0.0
    %139 = vmatpush2.msra.mxu0 0.0
    %140 = vmatprep.subr.mxu0 0.0
    %141 = vmatpush2.msra.mxu0 0.0
    %142 = vmatprep.subr.mxu0 0.0
    %143 = vmatpush2.msra.mxu0 0.0
    %144 = vmatprep.subr.mxu0 0.0
    %145 = vmatpush2.msra.mxu0 0.0
    %146 = vmatprep.subr.mxu0 0.0
    %147 = vmatpush2.msra.mxu0 0.0
    %148 = vmatprep.subr.mxu0 0.0
    %149 = vmatpush2.msra.mxu0 0.0
    %150 = vmatprep.subr.mxu0 0.0
    %151 = vmatpush2.msra.mxu0 0.0
    %152 = vmatprep.mubr.f32.mxu0 0.0
    %153 = vmatmul.mubr.f32.gmra.mxu0 %v86
    %v154 = vpop.f32.mrf.mxu0
    %v155 = vadd.f32 %v82, %v154
    %v156 = vpop.f32.mrf.mxu0
    %157 = vdwg.mxu0
    %vm158 = vcmask 23552
    %v159 = vsel %vm158, %v155, -inf
    %160 = vmax.xlane.f32.xlu0 %v159
    %v161 = vpop.xlane.xlu0 %160
    %v162 = vsub.f32 %v155, %v161
    %v163 = vmul.f32 %v162, 1.442695
    %v164 = vpow.pop %v163
    %v165 = vsel %vm158, %v164, 0.0
    %166 = vadd.xlane.f32.xlu0 %v165
    %v167 = vpop.xlane.xlu0 %166
    %v168 = vrcp.pop %v167
    %v169 = vmul.f32 %v164, %v168
    %v170 = vld [vmem:[%s2] sm:$0xff]
    %v171 = vld [vmem:[%s2 + $0x8] sm:$0xff]
    %v172 = vld [vmem:[%s2 + $0x10] sm:$0xff]
    %v173 = vld [vmem:[%s2 + $0x18] sm:$0xff]
    %v174 = vld [vmem:[%s3] sm:$0x1]
    %v176 = vlaneseq
    %v177 = vshrl.u32 %v176, 7
    %v178 = vsub.s32 0, %v177
    %v179 = vrot.slane %v174, %v178
    %181 = vmatprep.subr.mxu0 0.0
    %182 = vmatpush1.msra.mxu0 0.0
    %183 = vmatprep.subr.mxu0 0.0
    %184 = vmatpush1.msra.mxu0 0.0
    %185 = vmatprep.subr.mxu0 0.0
    %186 = vmatpush1.msra.mxu0 0.0
    %187 = vmatprep.subr.mxu0 0.0
    %188 = vmatpush1.msra.mxu0 0.0
    %189 = vmatprep.subr.mxu0 0.0
    %190 = vmatpush1.msra.mxu0 0.0
    %191 = vmatprep.subr.mxu0 0.0
    %192 = vmatpush1.msra.mxu0 0.0
    %193 = vmatprep.subr.mxu0 0.0
    %194 = vmatpush1.msra.mxu0 0.0
    %195 = vmatprep.subr.mxu0 0.0
    %196 = vmatpush1.msra.mxu0 0.0
    %197 = vmatprep.subr.mxu0 0.0
    %198 = vmatpush1.msra.mxu0 0.0
    %199 = vmatprep.subr.mxu0 0.0
    %200 = vmatpush1.msra.mxu0 0.0
    %201 = vmatprep.subr.mxu0 0.0
    %202 = vmatpush1.msra.mxu0 0.0
    %203 = vmatprep.subr.mxu0 0.0
    %204 = vmatpush1.msra.mxu0 0.0
    %205 = vmatprep.subr.mxu0 0.0
    %206 = vmatpush1.msra.mxu0 %v173
    %207 = vmatprep.subr.mxu0 0.0
    %208 = vmatpush1.msra.mxu0 %v172
    %209 = vmatprep.subr.mxu0 0.0
    %210 = vmatpush1.msra.mxu0 %v171
    %211 = vmatprep.subr.mxu0 0.0
    %212 = vmatpush1.msra.mxu0 %v170
    %213 = vmatprep.subr.mxu0 0.0
    %214 = vmatpush2.msra.mxu0 0.0
    %215 = vmatprep.subr.mxu0 0.0
    %216 = vmatpush2.msra.mxu0 0.0
    %217 = vmatprep.subr.mxu0 0.0
    %218 = vmatpush2.msra.mxu0 0.0
    %219 = vmatprep.subr.mxu0 0.0
    %220 = vmatpush2.msra.mxu0 0.0
    %221 = vmatprep.subr.mxu0 0.0
    %222 = vmatpush2.msra.mxu0 0.0
    %223 = vmatprep.subr.mxu0 0.0
    %224 = vmatpush2.msra.mxu0 0.0
    %225 = vmatprep.subr.mxu0 0.0
    %226 = vmatpush2.msra.mxu0 0.0
    %227 = vmatprep.subr.mxu0 0.0
    %228 = vmatpush2.msra.mxu0 0.0
    %229 = vmatprep.subr.mxu0 0.0
    %230 = vmatpush2.msra.mxu0 0.0
    %231 = vmatprep.subr.mxu0 0.0
    %232 = vmatpush2.msra.mxu0 0.0
    %233 = vmatprep.subr.mxu0 0.0
    %234 = vmatpush2.msra.mxu0 0.0
    %235 = vmatprep.subr.mxu0 0.0
    %236 = vmatpush2.msra.mxu0 0.0
    %237 = vmatprep.subr.mxu0 0.0
    %238 = vmatpush2.msra.mxu0 0.0
    %239 = vmatprep.subr.mxu0 0.0
    %240 = vmatpush2.msra.mxu0 0.0
    %241 = vmatprep.subr.mxu0 0.0
    %242 = vmatpush2.msra.mxu0 0.0
    %243 = vmatprep.subr.mxu0 0.0
    %244 = vmatpush2.msra.mxu0 0.0
    %245 = vmatprep.mubr.f32.mxu0 0.0
    %246 = vmatmul.mubr.f32.gmra.mxu0 %v86
    %v247 = vpop.f32.mrf.mxu0
    %v248 = vadd.f32 %v179, %v247
    %v249 = vpop.f32.mrf.mxu0
    %250 = vdwg.mxu0
    %v251 = vmax.f32 %v248, 0.0
    %v252 = vld [vmem:[%s4] sm:$0xff]
    %v253 = vld [vmem:[%s4 + $0x8] sm:$0xff]
    %v254 = vld [vmem:[%s4 + $0x10] sm:$0xff]
    %v255 = vld [vmem:[%s4 + $0x18] sm:$0xff]
    %v256 = vld [vmem:[%s4 + $0x20] sm:$0xff]
    %v257 = vld [vmem:[%s4 + $0x28] sm:$0xff]
    %v258 = vld [vmem:[%s4 + $0x30] sm:$0xff]
    %v259 = vld [vmem:[%s4 + $0x38] sm:$0xff]
    %v260 = vld [vmem:[%s5] sm:$0x1]
    %v262 = vlaneseq
    %v263 = vshrl.u32 %v262, 7
    %v264 = vsub.s32 0, %v263
    %v265 = vrot.slane %v260, %v264
    %vm267 = vcmask 523264
    %v269 = vsel %vm267, %v251, 0
    %271 = vmatprep.subr.mxu0 0.0
    %272 = vmatpush1.msra.mxu0 0.0
    %273 = vmatprep.subr.mxu0 0.0
    %274 = vmatpush1.msra.mxu0 0.0
    %275 = vmatprep.subr.mxu0 0.0
    %276 = vmatpush1.msra.mxu0 0.0
    %277 = vmatprep.subr.mxu0 0.0
    %278 = vmatpush1.msra.mxu0 0.0
    %279 = vmatprep.subr.mxu0 0.0
    %280 = vmatpush1.msra.mxu0 0.0
    %281 = vmatprep.subr.mxu0 0.0
    %282 = vmatpush1.msra.mxu0 0.0
    %283 = vmatprep.subr.mxu0 0.0
    %284 = vmatpush1.msra.mxu0 0.0
    %285 = vmatprep.subr.mxu0 0.0
    %286 = vmatpush1.msra.mxu0 0.0
    %287 = vmatprep.subr.mxu0 0.0
    %288 = vmatpush1.msra.mxu0 %v259
    %289 = vmatprep.subr.mxu0 0.0
    %290 = vmatpush1.msra.mxu0 %v258
    %291 = vmatprep.subr.mxu0 0.0
    %292 = vmatpush1.msra.mxu0 %v257
    %293 = vmatprep.subr.mxu0 0.0
    %294 = vmatpush1.msra.mxu0 %v256
    %295 = vmatprep.subr.mxu0 0.0
    %296 = vmatpush1.msra.mxu0 %v255
    %297 = vmatprep.subr.mxu0 0.0
    %298 = vmatpush1.msra.mxu0 %v254
    %299 = vmatprep.subr.mxu0 0.0
    %300 = vmatpush1.msra.mxu0 %v253
    %301 = vmatprep.subr.mxu0 0.0
    %302 = vmatpush1.msra.mxu0 %v252
    %303 = vmatprep.subr.mxu0 0.0
    %304 = vmatpush2.msra.mxu0 0.0
    %305 = vmatprep.subr.mxu0 0.0
    %306 = vmatpush2.msra.mxu0 0.0
    %307 = vmatprep.subr.mxu0 0.0
    %308 = vmatpush2.msra.mxu0 0.0
    %309 = vmatprep.subr.mxu0 0.0
    %310 = vmatpush2.msra.mxu0 0.0
    %311 = vmatprep.subr.mxu0 0.0
    %312 = vmatpush2.msra.mxu0 0.0
    %313 = vmatprep.subr.mxu0 0.0
    %314 = vmatpush2.msra.mxu0 0.0
    %315 = vmatprep.subr.mxu0 0.0
    %316 = vmatpush2.msra.mxu0 0.0
    %317 = vmatprep.subr.mxu0 0.0
    %318 = vmatpush2.msra.mxu0 0.0
    %319 = vmatprep.subr.mxu0 0.0
    %320 = vmatpush2.msra.mxu0 0.0
    %321 = vmatprep.subr.mxu0 0.0
    %322 = vmatpush2.msra.mxu0 0.0
    %323 = vmatprep.subr.mxu0 0.0
    %324 = vmatpush2.msra.mxu0 0.0
    %325 = vmatprep.subr.mxu0 0.0
    %326 = vmatpush2.msra.mxu0 0.0
    %327 = vmatprep.subr.mxu0 0.0
    %328 = vmatpush2.msra.mxu0 0.0
    %329 = vmatprep.subr.mxu0 0.0
    %330 = vmatpush2.msra.mxu0 0.0
    %331 = vmatprep.subr.mxu0 0.0
    %332 = vmatpush2.msra.mxu0 0.0
    %333 = vmatprep.subr.mxu0 0.0
    %334 = vmatpush2.msra.mxu0 0.0
    %335 = vmatprep.mubr.f32.mxu0 0.0
    %336 = vmatmul.mubr.f32.gmra.mxu0 %v269
    %v337 = vpop.f32.mrf.mxu0
    %v338 = vadd.f32 %v265, %v337
    %v339 = vpop.f32.mrf.mxu0
    %340 = vdwg.mxu0
    %v341 = vmax.f32 %v338, 0.0
    %343 = vset.pattern.permute.xlu0 0
    %344 = vperm.xlu0 %343, %v169
    %v345 = vpop.permute.xlu0 %344
    %v347 = vmul.f32 %v341, %v345
    %s348 = scalar_lea.vmem %s2, 32
    %v349 = vld [vmem:[%s348] sm:$0xff]
    %v350 = vld [vmem:[%s348 + $0x8] sm:$0xff]
    %v351 = vld [vmem:[%s348 + $0x10] sm:$0xff]
    %v352 = vld [vmem:[%s348 + $0x18] sm:$0xff]
    %s353 = scalar_lea.vmem %s3, 1
    %v354 = vld [vmem:[%s353] sm:$0x1]
    %v356 = vlaneseq
    %v357 = vshrl.u32 %v356, 7
    %v358 = vsub.s32 0, %v357
    %v359 = vrot.slane %v354, %v358
    %361 = vmatprep.subr.mxu0 0.0
    %362 = vmatpush1.msra.mxu0 0.0
    %363 = vmatprep.subr.mxu0 0.0
    %364 = vmatpush1.msra.mxu0 0.0
    %365 = vmatprep.subr.mxu0 0.0
    %366 = vmatpush1.msra.mxu0 0.0
    %367 = vmatprep.subr.mxu0 0.0
    %368 = vmatpush1.msra.mxu0 0.0
    %369 = vmatprep.subr.mxu0 0.0
    %370 = vmatpush1.msra.mxu0 0.0
    %371 = vmatprep.subr.mxu0 0.0
    %372 = vmatpush1.msra.mxu0 0.0
    %373 = vmatprep.subr.mxu0 0.0
    %374 = vmatpush1.msra.mxu0 0.0
    %375 = vmatprep.subr.mxu0 0.0
    %376 = vmatpush1.msra.mxu0 0.0
    %377 = vmatprep.subr.mxu0 0.0
    %378 = vmatpush1.msra.mxu0 0.0
    %379 = vmatprep.subr.mxu0 0.0
    %380 = vmatpush1.msra.mxu0 0.0
    %381 = vmatprep.subr.mxu0 0.0
    %382 = vmatpush1.msra.mxu0 0.0
    %383 = vmatprep.subr.mxu0 0.0
    %384 = vmatpush1.msra.mxu0 0.0
    %385 = vmatprep.subr.mxu0 0.0
    %386 = vmatpush1.msra.mxu0 %v352
    %387 = vmatprep.subr.mxu0 0.0
    %388 = vmatpush1.msra.mxu0 %v351
    %389 = vmatprep.subr.mxu0 0.0
    %390 = vmatpush1.msra.mxu0 %v350
    %391 = vmatprep.subr.mxu0 0.0
    %392 = vmatpush1.msra.mxu0 %v349
    %393 = vmatprep.subr.mxu0 0.0
    %394 = vmatpush2.msra.mxu0 0.0
    %395 = vmatprep.subr.mxu0 0.0
    %396 = vmatpush2.msra.mxu0 0.0
    %397 = vmatprep.subr.mxu0 0.0
    %398 = vmatpush2.msra.mxu0 0.0
    %399 = vmatprep.subr.mxu0 0.0
    %400 = vmatpush2.msra.mxu0 0.0
    %401 = vmatprep.subr.mxu0 0.0
    %402 = vmatpush2.msra.mxu0 0.0
    %403 = vmatprep.subr.mxu0 0.0
    %404 = vmatpush2.msra.mxu0 0.0
    %405 = vmatprep.subr.mxu0 0.0
    %406 = vmatpush2.msra.mxu0 0.0
    %407 = vmatprep.subr.mxu0 0.0
    %408 = vmatpush2.msra.mxu0 0.0
    %409 = vmatprep.subr.mxu0 0.0
    %410 = vmatpush2.msra.mxu0 0.0
    %411 = vmatprep.subr.mxu0 0.0
    %412 = vmatpush2.msra.mxu0 0.0
    %413 = vmatprep.subr.mxu0 0.0
    %414 = vmatpush2.msra.mxu0 0.0
    %415 = vmatprep.subr.mxu0 0.0
    %416 = vmatpush2.msra.mxu0 0.0
    %417 = vmatprep.subr.mxu0 0.0
    %418 = vmatpush2.msra.mxu0 0.0
    %419 = vmatprep.subr.mxu0 0.0
    %420 = vmatpush2.msra.mxu0 0.0
    %421 = vmatprep.subr.mxu0 0.0
    %422 = vmatpush2.msra.mxu0 0.0
    %423 = vmatprep.subr.mxu0 0.0
    %424 = vmatpush2.msra.mxu0 0.0
    %425 = vmatprep.mubr.f32.mxu0 0.0
    %426 = vmatmul.mubr.f32.gmra.mxu0 %v86
    %v427 = vpop.f32.mrf.mxu0
    %v428 = vadd.f32 %v359, %v427
    %v429 = vpop.f32.mrf.mxu0
    %430 = vdwg.mxu0
    %v431 = vmax.f32 %v428, 0.0
    %s432 = scalar_lea.vmem %s4, 64
    %v433 = vld [vmem:[%s432] sm:$0xff]
    %v434 = vld [vmem:[%s432 + $0x8] sm:$0xff]
    %v435 = vld [vmem:[%s432 + $0x10] sm:$0xff]
    %v436 = vld [vmem:[%s432 + $0x18] sm:$0xff]
    %v437 = vld [vmem:[%s432 + $0x20] sm:$0xff]
    %v438 = vld [vmem:[%s432 + $0x28] sm:$0xff]
    %v439 = vld [vmem:[%s432 + $0x30] sm:$0xff]
    %v440 = vld [vmem:[%s432 + $0x38] sm:$0xff]
    %s441 = scalar_lea.vmem %s5, 1
    %v442 = vld [vmem:[%s441] sm:$0x1]
    %v444 = vlaneseq
    %v445 = vshrl.u32 %v444, 7
    %v446 = vsub.s32 0, %v445
    %v447 = vrot.slane %v442, %v446
    %v450 = vsel %vm267, %v431, 0
    %452 = vmatprep.subr.mxu0 0.0
    %453 = vmatpush1.msra.mxu0 0.0
    %454 = vmatprep.subr.mxu0 0.0
    %455 = vmatpush1.msra.mxu0 0.0
    %456 = vmatprep.subr.mxu0 0.0
    %457 = vmatpush1.msra.mxu0 0.0
    %458 = vmatprep.subr.mxu0 0.0
    %459 = vmatpush1.msra.mxu0 0.0
    %460 = vmatprep.subr.mxu0 0.0
    %461 = vmatpush1.msra.mxu0 0.0
    %462 = vmatprep.subr.mxu0 0.0
    %463 = vmatpush1.msra.mxu0 0.0
    %464 = vmatprep.subr.mxu0 0.0
    %465 = vmatpush1.msra.mxu0 0.0
    %466 = vmatprep.subr.mxu0 0.0
    %467 = vmatpush1.msra.mxu0 0.0
    %468 = vmatprep.subr.mxu0 0.0
    %469 = vmatpush1.msra.mxu0 %v440
    %470 = vmatprep.subr.mxu0 0.0
    %471 = vmatpush1.msra.mxu0 %v439
    %472 = vmatprep.subr.mxu0 0.0
    %473 = vmatpush1.msra.mxu0 %v438
    %474 = vmatprep.subr.mxu0 0.0
    %475 = vmatpush1.msra.mxu0 %v437
    %476 = vmatprep.subr.mxu0 0.0
    %477 = vmatpush1.msra.mxu0 %v436
    %478 = vmatprep.subr.mxu0 0.0
    %479 = vmatpush1.msra.mxu0 %v435
    %480 = vmatprep.subr.mxu0 0.0
    %481 = vmatpush1.msra.mxu0 %v434
    %482 = vmatprep.subr.mxu0 0.0
    %483 = vmatpush1.msra.mxu0 %v433
    %484 = vmatprep.subr.mxu0 0.0
    %485 = vmatpush2.msra.mxu0 0.0
    %486 = vmatprep.subr.mxu0 0.0
    %487 = vmatpush2.msra.mxu0 0.0
    %488 = vmatprep.subr.mxu0 0.0
    %489 = vmatpush2.msra.mxu0 0.0
    %490 = vmatprep.subr.mxu0 0.0
    %491 = vmatpush2.msra.mxu0 0.0
    %492 = vmatprep.subr.mxu0 0.0
    %493 = vmatpush2.msra.mxu0 0.0
    %494 = vmatprep.subr.mxu0 0.0
    %495 = vmatpush2.msra.mxu0 0.0
    %496 = vmatprep.subr.mxu0 0.0
    %497 = vmatpush2.msra.mxu0 0.0
    %498 = vmatprep.subr.mxu0 0.0
    %499 = vmatpush2.msra.mxu0 0.0
    %500 = vmatprep.subr.mxu0 0.0
    %501 = vmatpush2.msra.mxu0 0.0
    %502 = vmatprep.subr.mxu0 0.0
    %503 = vmatpush2.msra.mxu0 0.0
    %504 = vmatprep.subr.mxu0 0.0
    %505 = vmatpush2.msra.mxu0 0.0
    %506 = vmatprep.subr.mxu0 0.0
    %507 = vmatpush2.msra.mxu0 0.0
    %508 = vmatprep.subr.mxu0 0.0
    %509 = vmatpush2.msra.mxu0 0.0
    %510 = vmatprep.subr.mxu0 0.0
    %511 = vmatpush2.msra.mxu0 0.0
    %512 = vmatprep.subr.mxu0 0.0
    %513 = vmatpush2.msra.mxu0 0.0
    %514 = vmatprep.subr.mxu0 0.0
    %515 = vmatpush2.msra.mxu0 0.0
    %516 = vmatprep.mubr.f32.mxu0 0.0
    %517 = vmatmul.mubr.f32.gmra.mxu0 %v450
    %v518 = vpop.f32.mrf.mxu0
    %v519 = vadd.f32 %v447, %v518
    %v520 = vpop.f32.mrf.mxu0
    %521 = vdwg.mxu0
    %v522 = vmax.f32 %v519, 0.0
    %523 = vset.pattern.permute.xlu0 1
    %524 = vperm.xlu0 %523, %v169
    %v525 = vpop.permute.xlu0 %524
    %v527 = vmul.f32 %v522, %v525
    %v528 = vadd.f32 %v347, %v527
    %s529 = scalar_lea.vmem %s2, 64
    %v530 = vld [vmem:[%s529] sm:$0xff]
    %v531 = vld [vmem:[%s529 + $0x8] sm:$0xff]
    %v532 = vld [vmem:[%s529 + $0x10] sm:$0xff]
    %v533 = vld [vmem:[%s529 + $0x18] sm:$0xff]
    %s534 = scalar_lea.vmem %s3, 2
    %v535 = vld [vmem:[%s534] sm:$0x1]
    %v537 = vlaneseq
    %v538 = vshrl.u32 %v537, 7
    %v539 = vsub.s32 0, %v538
    %v540 = vrot.slane %v535, %v539
    %542 = vmatprep.subr.mxu0 0.0
    %543 = vmatpush1.msra.mxu0 0.0
    %544 = vmatprep.subr.mxu0 0.0
    %545 = vmatpush1.msra.mxu0 0.0
    %546 = vmatprep.subr.mxu0 0.0
    %547 = vmatpush1.msra.mxu0 0.0
    %548 = vmatprep.subr.mxu0 0.0
    %549 = vmatpush1.msra.mxu0 0.0
    %550 = vmatprep.subr.mxu0 0.0
    %551 = vmatpush1.msra.mxu0 0.0
    %552 = vmatprep.subr.mxu0 0.0
    %553 = vmatpush1.msra.mxu0 0.0
    %554 = vmatprep.subr.mxu0 0.0
    %555 = vmatpush1.msra.mxu0 0.0
    %556 = vmatprep.subr.mxu0 0.0
    %557 = vmatpush1.msra.mxu0 0.0
    %558 = vmatprep.subr.mxu0 0.0
    %559 = vmatpush1.msra.mxu0 0.0
    %560 = vmatprep.subr.mxu0 0.0
    %561 = vmatpush1.msra.mxu0 0.0
    %562 = vmatprep.subr.mxu0 0.0
    %563 = vmatpush1.msra.mxu0 0.0
    %564 = vmatprep.subr.mxu0 0.0
    %565 = vmatpush1.msra.mxu0 0.0
    %566 = vmatprep.subr.mxu0 0.0
    %567 = vmatpush1.msra.mxu0 %v533
    %568 = vmatprep.subr.mxu0 0.0
    %569 = vmatpush1.msra.mxu0 %v532
    %570 = vmatprep.subr.mxu0 0.0
    %571 = vmatpush1.msra.mxu0 %v531
    %572 = vmatprep.subr.mxu0 0.0
    %573 = vmatpush1.msra.mxu0 %v530
    %574 = vmatprep.subr.mxu0 0.0
    %575 = vmatpush2.msra.mxu0 0.0
    %576 = vmatprep.subr.mxu0 0.0
    %577 = vmatpush2.msra.mxu0 0.0
    %578 = vmatprep.subr.mxu0 0.0
    %579 = vmatpush2.msra.mxu0 0.0
    %580 = vmatprep.subr.mxu0 0.0
    %581 = vmatpush2.msra.mxu0 0.0
    %582 = vmatprep.subr.mxu0 0.0
    %583 = vmatpush2.msra.mxu0 0.0
    %584 = vmatprep.subr.mxu0 0.0
    %585 = vmatpush2.msra.mxu0 0.0
    %586 = vmatprep.subr.mxu0 0.0
    %587 = vmatpush2.msra.mxu0 0.0
    %588 = vmatprep.subr.mxu0 0.0
    %589 = vmatpush2.msra.mxu0 0.0
    %590 = vmatprep.subr.mxu0 0.0
    %591 = vmatpush2.msra.mxu0 0.0
    %592 = vmatprep.subr.mxu0 0.0
    %593 = vmatpush2.msra.mxu0 0.0
    %594 = vmatprep.subr.mxu0 0.0
    %595 = vmatpush2.msra.mxu0 0.0
    %596 = vmatprep.subr.mxu0 0.0
    %597 = vmatpush2.msra.mxu0 0.0
    %598 = vmatprep.subr.mxu0 0.0
    %599 = vmatpush2.msra.mxu0 0.0
    %600 = vmatprep.subr.mxu0 0.0
    %601 = vmatpush2.msra.mxu0 0.0
    %602 = vmatprep.subr.mxu0 0.0
    %603 = vmatpush2.msra.mxu0 0.0
    %604 = vmatprep.subr.mxu0 0.0
    %605 = vmatpush2.msra.mxu0 0.0
    %606 = vmatprep.mubr.f32.mxu0 0.0
    %607 = vmatmul.mubr.f32.gmra.mxu0 %v86
    %v608 = vpop.f32.mrf.mxu0
    %v609 = vadd.f32 %v540, %v608
    %v610 = vpop.f32.mrf.mxu0
    %611 = vdwg.mxu0
    %v612 = vmax.f32 %v609, 0.0
    %s613 = scalar_lea.vmem %s4, 128
    %v614 = vld [vmem:[%s613] sm:$0xff]
    %v615 = vld [vmem:[%s613 + $0x8] sm:$0xff]
    %v616 = vld [vmem:[%s613 + $0x10] sm:$0xff]
    %v617 = vld [vmem:[%s613 + $0x18] sm:$0xff]
    %v618 = vld [vmem:[%s613 + $0x20] sm:$0xff]
    %v619 = vld [vmem:[%s613 + $0x28] sm:$0xff]
    %v620 = vld [vmem:[%s613 + $0x30] sm:$0xff]
    %v621 = vld [vmem:[%s613 + $0x38] sm:$0xff]
    %s622 = scalar_lea.vmem %s5, 2
    %v623 = vld [vmem:[%s622] sm:$0x1]
    %v625 = vlaneseq
    %v626 = vshrl.u32 %v625, 7
    %v627 = vsub.s32 0, %v626
    %v628 = vrot.slane %v623, %v627
    %v631 = vsel %vm267, %v612, 0
    %633 = vmatprep.subr.mxu0 0.0
    %634 = vmatpush1.msra.mxu0 0.0
    %635 = vmatprep.subr.mxu0 0.0
    %636 = vmatpush1.msra.mxu0 0.0
    %637 = vmatprep.subr.mxu0 0.0
    %638 = vmatpush1.msra.mxu0 0.0
    %639 = vmatprep.subr.mxu0 0.0
    %640 = vmatpush1.msra.mxu0 0.0
    %641 = vmatprep.subr.mxu0 0.0
    %642 = vmatpush1.msra.mxu0 0.0
    %643 = vmatprep.subr.mxu0 0.0
    %644 = vmatpush1.msra.mxu0 0.0
    %645 = vmatprep.subr.mxu0 0.0
    %646 = vmatpush1.msra.mxu0 0.0
    %647 = vmatprep.subr.mxu0 0.0
    %648 = vmatpush1.msra.mxu0 0.0
    %649 = vmatprep.subr.mxu0 0.0
    %650 = vmatpush1.msra.mxu0 %v621
    %651 = vmatprep.subr.mxu0 0.0
    %652 = vmatpush1.msra.mxu0 %v620
    %653 = vmatprep.subr.mxu0 0.0
    %654 = vmatpush1.msra.mxu0 %v619
    %655 = vmatprep.subr.mxu0 0.0
    %656 = vmatpush1.msra.mxu0 %v618
    %657 = vmatprep.subr.mxu0 0.0
    %658 = vmatpush1.msra.mxu0 %v617
    %659 = vmatprep.subr.mxu0 0.0
    %660 = vmatpush1.msra.mxu0 %v616
    %661 = vmatprep.subr.mxu0 0.0
    %662 = vmatpush1.msra.mxu0 %v615
    %663 = vmatprep.subr.mxu0 0.0
    %664 = vmatpush1.msra.mxu0 %v614
    %665 = vmatprep.subr.mxu0 0.0
    %666 = vmatpush2.msra.mxu0 0.0
    %667 = vmatprep.subr.mxu0 0.0
    %668 = vmatpush2.msra.mxu0 0.0
    %669 = vmatprep.subr.mxu0 0.0
    %670 = vmatpush2.msra.mxu0 0.0
    %671 = vmatprep.subr.mxu0 0.0
    %672 = vmatpush2.msra.mxu0 0.0
    %673 = vmatprep.subr.mxu0 0.0
    %674 = vmatpush2.msra.mxu0 0.0
    %675 = vmatprep.subr.mxu0 0.0
    %676 = vmatpush2.msra.mxu0 0.0
    %677 = vmatprep.subr.mxu0 0.0
    %678 = vmatpush2.msra.mxu0 0.0
    %679 = vmatprep.subr.mxu0 0.0
    %680 = vmatpush2.msra.mxu0 0.0
    %681 = vmatprep.subr.mxu0 0.0
    %682 = vmatpush2.msra.mxu0 0.0
    %683 = vmatprep.subr.mxu0 0.0
    %684 = vmatpush2.msra.mxu0 0.0
    %685 = vmatprep.subr.mxu0 0.0
    %686 = vmatpush2.msra.mxu0 0.0
    %687 = vmatprep.subr.mxu0 0.0
    %688 = vmatpush2.msra.mxu0 0.0
    %689 = vmatprep.subr.mxu0 0.0
    %690 = vmatpush2.msra.mxu0 0.0
    %691 = vmatprep.subr.mxu0 0.0
    %692 = vmatpush2.msra.mxu0 0.0
    %693 = vmatprep.subr.mxu0 0.0
    %694 = vmatpush2.msra.mxu0 0.0
    %695 = vmatprep.subr.mxu0 0.0
    %696 = vmatpush2.msra.mxu0 0.0
    %697 = vmatprep.mubr.f32.mxu0 0.0
    %698 = vmatmul.mubr.f32.gmra.mxu0 %v631
    %v699 = vpop.f32.mrf.mxu0
    %v700 = vadd.f32 %v628, %v699
    %v701 = vpop.f32.mrf.mxu0
    %702 = vdwg.mxu0
    %v703 = vmax.f32 %v700, 0.0
    %704 = vset.pattern.permute.xlu0 2
    %705 = vperm.xlu0 %704, %v169
    %v706 = vpop.permute.xlu0 %705
    %v708 = vmul.f32 %v703, %v706
    %v709 = vadd.f32 %v528, %v708
    %v710 = vld [vmem:[%s8] sm:$0xff]
    %v711 = vld [vmem:[%s8 + $0x8] sm:$0xff]
    %v712 = vld [vmem:[%s8 + $0x10] sm:$0xff]
    %v713 = vld [vmem:[%s8 + $0x18] sm:$0xff]
    %v714 = vld [vmem:[%s9] sm:$0x1]
    %v716 = vlaneseq
    %v717 = vshrl.u32 %v716, 7
    %v718 = vsub.s32 0, %v717
    %v719 = vrot.slane %v714, %v718
    %v722 = vsel %vm84, %v709, 0
    %724 = vmatprep.subr.mxu0 0.0
    %725 = vmatpush1.msra.mxu0 0.0
    %726 = vmatprep.subr.mxu0 0.0
    %727 = vmatpush1.msra.mxu0 0.0
    %728 = vmatprep.subr.mxu0 0.0
    %729 = vmatpush1.msra.mxu0 0.0
    %730 = vmatprep.subr.mxu0 0.0
    %731 = vmatpush1.msra.mxu0 0.0
    %732 = vmatprep.subr.mxu0 0.0
    %733 = vmatpush1.msra.mxu0 0.0
    %734 = vmatprep.subr.mxu0 0.0
    %735 = vmatpush1.msra.mxu0 0.0
    %736 = vmatprep.subr.mxu0 0.0
    %737 = vmatpush1.msra.mxu0 0.0
    %738 = vmatprep.subr.mxu0 0.0
    %739 = vmatpush1.msra.mxu0 0.0
    %740 = vmatprep.subr.mxu0 0.0
    %741 = vmatpush1.msra.mxu0 0.0
    %742 = vmatprep.subr.mxu0 0.0
    %743 = vmatpush1.msra.mxu0 0.0
    %744 = vmatprep.subr.mxu0 0.0
    %745 = vmatpush1.msra.mxu0 0.0
    %746 = vmatprep.subr.mxu0 0.0
    %747 = vmatpush1.msra.mxu0 0.0
    %748 = vmatprep.subr.mxu0 0.0
    %749 = vmatpush1.msra.mxu0 %v713
    %750 = vmatprep.subr.mxu0 0.0
    %751 = vmatpush1.msra.mxu0 %v712
    %752 = vmatprep.subr.mxu0 0.0
    %753 = vmatpush1.msra.mxu0 %v711
    %754 = vmatprep.subr.mxu0 0.0
    %755 = vmatpush1.msra.mxu0 %v710
    %756 = vmatprep.subr.mxu0 0.0
    %757 = vmatpush2.msra.mxu0 0.0
    %758 = vmatprep.subr.mxu0 0.0
    %759 = vmatpush2.msra.mxu0 0.0
    %760 = vmatprep.subr.mxu0 0.0
    %761 = vmatpush2.msra.mxu0 0.0
    %762 = vmatprep.subr.mxu0 0.0
    %763 = vmatpush2.msra.mxu0 0.0
    %764 = vmatprep.subr.mxu0 0.0
    %765 = vmatpush2.msra.mxu0 0.0
    %766 = vmatprep.subr.mxu0 0.0
    %767 = vmatpush2.msra.mxu0 0.0
    %768 = vmatprep.subr.mxu0 0.0
    %769 = vmatpush2.msra.mxu0 0.0
    %770 = vmatprep.subr.mxu0 0.0
    %771 = vmatpush2.msra.mxu0 0.0
    %772 = vmatprep.subr.mxu0 0.0
    %773 = vmatpush2.msra.mxu0 0.0
    %774 = vmatprep.subr.mxu0 0.0
    %775 = vmatpush2.msra.mxu0 0.0
    %776 = vmatprep.subr.mxu0 0.0
    %777 = vmatpush2.msra.mxu0 0.0
    %778 = vmatprep.subr.mxu0 0.0
    %779 = vmatpush2.msra.mxu0 0.0
    %780 = vmatprep.subr.mxu0 0.0
    %781 = vmatpush2.msra.mxu0 0.0
    %782 = vmatprep.subr.mxu0 0.0
    %783 = vmatpush2.msra.mxu0 0.0
    %784 = vmatprep.subr.mxu0 0.0
    %785 = vmatpush2.msra.mxu0 0.0
    %786 = vmatprep.subr.mxu0 0.0
    %787 = vmatpush2.msra.mxu0 0.0
    %788 = vmatprep.mubr.f32.mxu0 0.0
    %789 = vmatmul.mubr.f32.gmra.mxu0 %v722
    %v790 = vpop.f32.mrf.mxu0
    %v791 = vadd.f32 %v719, %v790
    %v792 = vpop.f32.mrf.mxu0
    %793 = vdwg.mxu0
    %v794 = vmax.f32 %v791, 0.0
    %v795 = vld [vmem:[%s10] sm:$0xff]
    %v796 = vld [vmem:[%s10 + $0x8] sm:$0xff]
    %v797 = vld [vmem:[%s11] sm:$0x1]
    %v799 = vlaneseq
    %v800 = vshrl.u32 %v799, 7
    %v801 = vsub.s32 0, %v800
    %v802 = vrot.slane %v797, %v801
    %vm804 = vcmask 130048
    %v806 = vsel %vm804, %v794, 0
    %808 = vmatprep.subr.mxu0 0.0
    %809 = vmatpush1.msra.mxu0 0.0
    %810 = vmatprep.subr.mxu0 0.0
    %811 = vmatpush1.msra.mxu0 0.0
    %812 = vmatprep.subr.mxu0 0.0
    %813 = vmatpush1.msra.mxu0 0.0
    %814 = vmatprep.subr.mxu0 0.0
    %815 = vmatpush1.msra.mxu0 0.0
    %816 = vmatprep.subr.mxu0 0.0
    %817 = vmatpush1.msra.mxu0 0.0
    %818 = vmatprep.subr.mxu0 0.0
    %819 = vmatpush1.msra.mxu0 0.0
    %820 = vmatprep.subr.mxu0 0.0
    %821 = vmatpush1.msra.mxu0 0.0
    %822 = vmatprep.subr.mxu0 0.0
    %823 = vmatpush1.msra.mxu0 0.0
    %824 = vmatprep.subr.mxu0 0.0
    %825 = vmatpush1.msra.mxu0 0.0
    %826 = vmatprep.subr.mxu0 0.0
    %827 = vmatpush1.msra.mxu0 0.0
    %828 = vmatprep.subr.mxu0 0.0
    %829 = vmatpush1.msra.mxu0 0.0
    %830 = vmatprep.subr.mxu0 0.0
    %831 = vmatpush1.msra.mxu0 0.0
    %832 = vmatprep.subr.mxu0 0.0
    %833 = vmatpush1.msra.mxu0 0.0
    %834 = vmatprep.subr.mxu0 0.0
    %835 = vmatpush1.msra.mxu0 0.0
    %836 = vmatprep.subr.mxu0 0.0
    %837 = vmatpush1.msra.mxu0 %v796
    %838 = vmatprep.subr.mxu0 0.0
    %839 = vmatpush1.msra.mxu0 %v795
    %840 = vmatprep.subr.mxu0 0.0
    %841 = vmatpush2.msra.mxu0 0.0
    %842 = vmatprep.subr.mxu0 0.0
    %843 = vmatpush2.msra.mxu0 0.0
    %844 = vmatprep.subr.mxu0 0.0
    %845 = vmatpush2.msra.mxu0 0.0
    %846 = vmatprep.subr.mxu0 0.0
    %847 = vmatpush2.msra.mxu0 0.0
    %848 = vmatprep.subr.mxu0 0.0
    %849 = vmatpush2.msra.mxu0 0.0
    %850 = vmatprep.subr.mxu0 0.0
    %851 = vmatpush2.msra.mxu0 0.0
    %852 = vmatprep.subr.mxu0 0.0
    %853 = vmatpush2.msra.mxu0 0.0
    %854 = vmatprep.subr.mxu0 0.0
    %855 = vmatpush2.msra.mxu0 0.0
    %856 = vmatprep.subr.mxu0 0.0
    %857 = vmatpush2.msra.mxu0 0.0
    %858 = vmatprep.subr.mxu0 0.0
    %859 = vmatpush2.msra.mxu0 0.0
    %860 = vmatprep.subr.mxu0 0.0
    %861 = vmatpush2.msra.mxu0 0.0
    %862 = vmatprep.subr.mxu0 0.0
    %863 = vmatpush2.msra.mxu0 0.0
    %864 = vmatprep.subr.mxu0 0.0
    %865 = vmatpush2.msra.mxu0 0.0
    %866 = vmatprep.subr.mxu0 0.0
    %867 = vmatpush2.msra.mxu0 0.0
    %868 = vmatprep.subr.mxu0 0.0
    %869 = vmatpush2.msra.mxu0 0.0
    %870 = vmatprep.subr.mxu0 0.0
    %871 = vmatpush2.msra.mxu0 0.0
    %872 = vmatprep.mubr.f32.mxu0 0.0
    %873 = vmatmul.mubr.f32.gmra.mxu0 %v806
    %v874 = vpop.f32.mrf.mxu0
    %v875 = vadd.f32 %v802, %v874
    %v876 = vpop.f32.mrf.mxu0
    %877 = vdwg.mxu0
    %v878 = vmax.f32 %v875, 0.0
    %v879 = vld [vmem:[%s1] sm:$0xff]
    %v880 = vld [vmem:[%s16] sm:$0xff]
    %v881 = vld [vmem:[%s16 + $0x8] sm:$0xff]
    %v882 = vld [vmem:[%s16 + $0x10] sm:$0xff]
    %v883 = vld [vmem:[%s16 + $0x18] sm:$0xff]
    %v884 = vld [vmem:[%s17] sm:$0x1]
    %v886 = vlaneseq
    %v887 = vshrl.u32 %v886, 7
    %v888 = vsub.s32 0, %v887
    %v889 = vrot.slane %v884, %v888
    %v892 = vsel %vm84, %v879, 0
    %894 = vmatprep.subr.mxu0 0.0
    %895 = vmatpush1.msra.mxu0 0.0
    %896 = vmatprep.subr.mxu0 0.0
    %897 = vmatpush1.msra.mxu0 0.0
    %898 = vmatprep.subr.mxu0 0.0
    %899 = vmatpush1.msra.mxu0 0.0
    %900 = vmatprep.subr.mxu0 0.0
    %901 = vmatpush1.msra.mxu0 0.0
    %902 = vmatprep.subr.mxu0 0.0
    %903 = vmatpush1.msra.mxu0 0.0
    %904 = vmatprep.subr.mxu0 0.0
    %905 = vmatpush1.msra.mxu0 0.0
    %906 = vmatprep.subr.mxu0 0.0
    %907 = vmatpush1.msra.mxu0 0.0
    %908 = vmatprep.subr.mxu0 0.0
    %909 = vmatpush1.msra.mxu0 0.0
    %910 = vmatprep.subr.mxu0 0.0
    %911 = vmatpush1.msra.mxu0 0.0
    %912 = vmatprep.subr.mxu0 0.0
    %913 = vmatpush1.msra.mxu0 0.0
    %914 = vmatprep.subr.mxu0 0.0
    %915 = vmatpush1.msra.mxu0 0.0
    %916 = vmatprep.subr.mxu0 0.0
    %917 = vmatpush1.msra.mxu0 0.0
    %918 = vmatprep.subr.mxu0 0.0
    %919 = vmatpush1.msra.mxu0 %v883
    %920 = vmatprep.subr.mxu0 0.0
    %921 = vmatpush1.msra.mxu0 %v882
    %922 = vmatprep.subr.mxu0 0.0
    %923 = vmatpush1.msra.mxu0 %v881
    %924 = vmatprep.subr.mxu0 0.0
    %925 = vmatpush1.msra.mxu0 %v880
    %926 = vmatprep.subr.mxu0 0.0
    %927 = vmatpush2.msra.mxu0 0.0
    %928 = vmatprep.subr.mxu0 0.0
    %929 = vmatpush2.msra.mxu0 0.0
    %930 = vmatprep.subr.mxu0 0.0
    %931 = vmatpush2.msra.mxu0 0.0
    %932 = vmatprep.subr.mxu0 0.0
    %933 = vmatpush2.msra.mxu0 0.0
    %934 = vmatprep.subr.mxu0 0.0
    %935 = vmatpush2.msra.mxu0 0.0
    %936 = vmatprep.subr.mxu0 0.0
    %937 = vmatpush2.msra.mxu0 0.0
    %938 = vmatprep.subr.mxu0 0.0
    %939 = vmatpush2.msra.mxu0 0.0
    %940 = vmatprep.subr.mxu0 0.0
    %941 = vmatpush2.msra.mxu0 0.0
    %942 = vmatprep.subr.mxu0 0.0
    %943 = vmatpush2.msra.mxu0 0.0
    %944 = vmatprep.subr.mxu0 0.0
    %945 = vmatpush2.msra.mxu0 0.0
    %946 = vmatprep.subr.mxu0 0.0
    %947 = vmatpush2.msra.mxu0 0.0
    %948 = vmatprep.subr.mxu0 0.0
    %949 = vmatpush2.msra.mxu0 0.0
    %950 = vmatprep.subr.mxu0 0.0
    %951 = vmatpush2.msra.mxu0 0.0
    %952 = vmatprep.subr.mxu0 0.0
    %953 = vmatpush2.msra.mxu0 0.0
    %954 = vmatprep.subr.mxu0 0.0
    %955 = vmatpush2.msra.mxu0 0.0
    %956 = vmatprep.subr.mxu0 0.0
    %957 = vmatpush2.msra.mxu0 0.0
    %958 = vmatprep.mubr.f32.mxu0 0.0
    %959 = vmatmul.mubr.f32.gmra.mxu0 %v892
    %v960 = vpop.f32.mrf.mxu0
    %v961 = vadd.f32 %v889, %v960
    %v962 = vpop.f32.mrf.mxu0
    %963 = vdwg.mxu0
    %v964 = vsel %vm158, %v961, -inf
    %965 = vmax.xlane.f32.xlu0 %v964
    %v966 = vpop.xlane.xlu0 %965
    %v967 = vsub.f32 %v961, %v966
    %v968 = vmul.f32 %v967, 1.442695
    %v969 = vpow.pop %v968
    %v970 = vsel %vm158, %v969, 0.0
    %971 = vadd.xlane.f32.xlu0 %v970
    %v972 = vpop.xlane.xlu0 %971
    %v973 = vrcp.pop %v972
    %v974 = vmul.f32 %v969, %v973
    %v975 = vld [vmem:[%s12] sm:$0xff]
    %v976 = vld [vmem:[%s12 + $0x8] sm:$0xff]
    %v977 = vld [vmem:[%s12 + $0x10] sm:$0xff]
    %v978 = vld [vmem:[%s12 + $0x18] sm:$0xff]
    %v979 = vld [vmem:[%s13] sm:$0x1]
    %v981 = vlaneseq
    %v982 = vshrl.u32 %v981, 7
    %v983 = vsub.s32 0, %v982
    %v984 = vrot.slane %v979, %v983
    %986 = vmatprep.subr.mxu0 0.0
    %987 = vmatpush1.msra.mxu0 0.0
    %988 = vmatprep.subr.mxu0 0.0
    %989 = vmatpush1.msra.mxu0 0.0
    %990 = vmatprep.subr.mxu0 0.0
    %991 = vmatpush1.msra.mxu0 0.0
    %992 = vmatprep.subr.mxu0 0.0
    %993 = vmatpush1.msra.mxu0 0.0
    %994 = vmatprep.subr.mxu0 0.0
    %995 = vmatpush1.msra.mxu0 0.0
    %996 = vmatprep.subr.mxu0 0.0
    %997 = vmatpush1.msra.mxu0 0.0
    %998 = vmatprep.subr.mxu0 0.0
    %999 = vmatpush1.msra.mxu0 0.0
    %1000 = vmatprep.subr.mxu0 0.0
    %1001 = vmatpush1.msra.mxu0 0.0
    %1002 = vmatprep.subr.mxu0 0.0
    %1003 = vmatpush1.msra.mxu0 0.0
    %1004 = vmatprep.subr.mxu0 0.0
    %1005 = vmatpush1.msra.mxu0 0.0
    %1006 = vmatprep.subr.mxu0 0.0
    %1007 = vmatpush1.msra.mxu0 0.0
    %1008 = vmatprep.subr.mxu0 0.0
    %1009 = vmatpush1.msra.mxu0 0.0
    %1010 = vmatprep.subr.mxu0 0.0
    %1011 = vmatpush1.msra.mxu0 %v978
    %1012 = vmatprep.subr.mxu0 0.0
    %1013 = vmatpush1.msra.mxu0 %v977
    %1014 = vmatprep.subr.mxu0 0.0
    %1015 = vmatpush1.msra.mxu0 %v976
    %1016 = vmatprep.subr.mxu0 0.0
    %1017 = vmatpush1.msra.mxu0 %v975
    %1018 = vmatprep.subr.mxu0 0.0
    %1019 = vmatpush2.msra.mxu0 0.0
    %1020 = vmatprep.subr.mxu0 0.0
    %1021 = vmatpush2.msra.mxu0 0.0
    %1022 = vmatprep.subr.mxu0 0.0
    %1023 = vmatpush2.msra.mxu0 0.0
    %1024 = vmatprep.subr.mxu0 0.0
    %1025 = vmatpush2.msra.mxu0 0.0
    %1026 = vmatprep.subr.mxu0 0.0
    %1027 = vmatpush2.msra.mxu0 0.0
    %1028 = vmatprep.subr.mxu0 0.0
    %1029 = vmatpush2.msra.mxu0 0.0
    %1030 = vmatprep.subr.mxu0 0.0
    %1031 = vmatpush2.msra.mxu0 0.0
    %1032 = vmatprep.subr.mxu0 0.0
    %1033 = vmatpush2.msra.mxu0 0.0
    %1034 = vmatprep.subr.mxu0 0.0
    %1035 = vmatpush2.msra.mxu0 0.0
    %1036 = vmatprep.subr.mxu0 0.0
    %1037 = vmatpush2.msra.mxu0 0.0
    %1038 = vmatprep.subr.mxu0 0.0
    %1039 = vmatpush2.msra.mxu0 0.0
    %1040 = vmatprep.subr.mxu0 0.0
    %1041 = vmatpush2.msra.mxu0 0.0
    %1042 = vmatprep.subr.mxu0 0.0
    %1043 = vmatpush2.msra.mxu0 0.0
    %1044 = vmatprep.subr.mxu0 0.0
    %1045 = vmatpush2.msra.mxu0 0.0
    %1046 = vmatprep.subr.mxu0 0.0
    %1047 = vmatpush2.msra.mxu0 0.0
    %1048 = vmatprep.subr.mxu0 0.0
    %1049 = vmatpush2.msra.mxu0 0.0
    %1050 = vmatprep.mubr.f32.mxu0 0.0
    %1051 = vmatmul.mubr.f32.gmra.mxu0 %v892
    %v1052 = vpop.f32.mrf.mxu0
    %v1053 = vadd.f32 %v984, %v1052
    %v1054 = vpop.f32.mrf.mxu0
    %1055 = vdwg.mxu0
    %v1056 = vmax.f32 %v1053, 0.0
    %v1057 = vld [vmem:[%s14] sm:$0xff]
    %v1058 = vld [vmem:[%s14 + $0x8] sm:$0xff]
    %v1059 = vld [vmem:[%s14 + $0x10] sm:$0xff]
    %v1060 = vld [vmem:[%s14 + $0x18] sm:$0xff]
    %v1061 = vld [vmem:[%s14 + $0x20] sm:$0xff]
    %v1062 = vld [vmem:[%s14 + $0x28] sm:$0xff]
    %v1063 = vld [vmem:[%s14 + $0x30] sm:$0xff]
    %v1064 = vld [vmem:[%s14 + $0x38] sm:$0xff]
    %v1065 = vld [vmem:[%s15] sm:$0x1]
    %v1067 = vlaneseq
    %v1068 = vshrl.u32 %v1067, 7
    %v1069 = vsub.s32 0, %v1068
    %v1070 = vrot.slane %v1065, %v1069
    %v1073 = vsel %vm267, %v1056, 0
    %1075 = vmatprep.subr.mxu0 0.0
    %1076 = vmatpush1.msra.mxu0 0.0
    %1077 = vmatprep.subr.mxu0 0.0
    %1078 = vmatpush1.msra.mxu0 0.0
    %1079 = vmatprep.subr.mxu0 0.0
    %1080 = vmatpush1.msra.mxu0 0.0
    %1081 = vmatprep.subr.mxu0 0.0
    %1082 = vmatpush1.msra.mxu0 0.0
    %1083 = vmatprep.subr.mxu0 0.0
    %1084 = vmatpush1.msra.mxu0 0.0
    %1085 = vmatprep.subr.mxu0 0.0
    %1086 = vmatpush1.msra.mxu0 0.0
    %1087 = vmatprep.subr.mxu0 0.0
    %1088 = vmatpush1.msra.mxu0 0.0
    %1089 = vmatprep.subr.mxu0 0.0
    %1090 = vmatpush1.msra.mxu0 0.0
    %1091 = vmatprep.subr.mxu0 0.0
    %1092 = vmatpush1.msra.mxu0 %v1064
    %1093 = vmatprep.subr.mxu0 0.0
    %1094 = vmatpush1.msra.mxu0 %v1063
    %1095 = vmatprep.subr.mxu0 0.0
    %1096 = vmatpush1.msra.mxu0 %v1062
    %1097 = vmatprep.subr.mxu0 0.0
    %1098 = vmatpush1.msra.mxu0 %v1061
    %1099 = vmatprep.subr.mxu0 0.0
    %1100 = vmatpush1.msra.mxu0 %v1060
    %1101 = vmatprep.subr.mxu0 0.0
    %1102 = vmatpush1.msra.mxu0 %v1059
    %1103 = vmatprep.subr.mxu0 0.0
    %1104 = vmatpush1.msra.mxu0 %v1058
    %1105 = vmatprep.subr.mxu0 0.0
    %1106 = vmatpush1.msra.mxu0 %v1057
    %1107 = vmatprep.subr.mxu0 0.0
    %1108 = vmatpush2.msra.mxu0 0.0
    %1109 = vmatprep.subr.mxu0 0.0
    %1110 = vmatpush2.msra.mxu0 0.0
    %1111 = vmatprep.subr.mxu0 0.0
    %1112 = vmatpush2.msra.mxu0 0.0
    %1113 = vmatprep.subr.mxu0 0.0
    %1114 = vmatpush2.msra.mxu0 0.0
    %1115 = vmatprep.subr.mxu0 0.0
    %1116 = vmatpush2.msra.mxu0 0.0
    %1117 = vmatprep.subr.mxu0 0.0
    %1118 = vmatpush2.msra.mxu0 0.0
    %1119 = vmatprep.subr.mxu0 0.0
    %1120 = vmatpush2.msra.mxu0 0.0
    %1121 = vmatprep.subr.mxu0 0.0
    %1122 = vmatpush2.msra.mxu0 0.0
    %1123 = vmatprep.subr.mxu0 0.0
    %1124 = vmatpush2.msra.mxu0 0.0
    %1125 = vmatprep.subr.mxu0 0.0
    %1126 = vmatpush2.msra.mxu0 0.0
    %1127 = vmatprep.subr.mxu0 0.0
    %1128 = vmatpush2.msra.mxu0 0.0
    %1129 = vmatprep.subr.mxu0 0.0
    %1130 = vmatpush2.msra.mxu0 0.0
    %1131 = vmatprep.subr.mxu0 0.0
    %1132 = vmatpush2.msra.mxu0 0.0
    %1133 = vmatprep.subr.mxu0 0.0
    %1134 = vmatpush2.msra.mxu0 0.0
    %1135 = vmatprep.subr.mxu0 0.0
    %1136 = vmatpush2.msra.mxu0 0.0
    %1137 = vmatprep.subr.mxu0 0.0
    %1138 = vmatpush2.msra.mxu0 0.0
    %1139 = vmatprep.mubr.f32.mxu0 0.0
    %1140 = vmatmul.mubr.f32.gmra.mxu0 %v1073
    %v1141 = vpop.f32.mrf.mxu0
    %v1142 = vadd.f32 %v1070, %v1141
    %v1143 = vpop.f32.mrf.mxu0
    %1144 = vdwg.mxu0
    %v1145 = vmax.f32 %v1142, 0.0
    %1147 = vset.pattern.permute.xlu0 0
    %1148 = vperm.xlu0 %1147, %v974
    %v1149 = vpop.permute.xlu0 %1148
    %v1151 = vmul.f32 %v1145, %v1149
    %s1152 = scalar_lea.vmem %s12, 32
    %v1153 = vld [vmem:[%s1152] sm:$0xff]
    %v1154 = vld [vmem:[%s1152 + $0x8] sm:$0xff]
    %v1155 = vld [vmem:[%s1152 + $0x10] sm:$0xff]
    %v1156 = vld [vmem:[%s1152 + $0x18] sm:$0xff]
    %s1157 = scalar_lea.vmem %s13, 1
    %v1158 = vld [vmem:[%s1157] sm:$0x1]
    %v1160 = vlaneseq
    %v1161 = vshrl.u32 %v1160, 7
    %v1162 = vsub.s32 0, %v1161
    %v1163 = vrot.slane %v1158, %v1162
    %1165 = vmatprep.subr.mxu0 0.0
    %1166 = vmatpush1.msra.mxu0 0.0
    %1167 = vmatprep.subr.mxu0 0.0
    %1168 = vmatpush1.msra.mxu0 0.0
    %1169 = vmatprep.subr.mxu0 0.0
    %1170 = vmatpush1.msra.mxu0 0.0
    %1171 = vmatprep.subr.mxu0 0.0
    %1172 = vmatpush1.msra.mxu0 0.0
    %1173 = vmatprep.subr.mxu0 0.0
    %1174 = vmatpush1.msra.mxu0 0.0
    %1175 = vmatprep.subr.mxu0 0.0
    %1176 = vmatpush1.msra.mxu0 0.0
    %1177 = vmatprep.subr.mxu0 0.0
    %1178 = vmatpush1.msra.mxu0 0.0
    %1179 = vmatprep.subr.mxu0 0.0
    %1180 = vmatpush1.msra.mxu0 0.0
    %1181 = vmatprep.subr.mxu0 0.0
    %1182 = vmatpush1.msra.mxu0 0.0
    %1183 = vmatprep.subr.mxu0 0.0
    %1184 = vmatpush1.msra.mxu0 0.0
    %1185 = vmatprep.subr.mxu0 0.0
    %1186 = vmatpush1.msra.mxu0 0.0
    %1187 = vmatprep.subr.mxu0 0.0
    %1188 = vmatpush1.msra.mxu0 0.0
    %1189 = vmatprep.subr.mxu0 0.0
    %1190 = vmatpush1.msra.mxu0 %v1156
    %1191 = vmatprep.subr.mxu0 0.0
    %1192 = vmatpush1.msra.mxu0 %v1155
    %1193 = vmatprep.subr.mxu0 0.0
    %1194 = vmatpush1.msra.mxu0 %v1154
    %1195 = vmatprep.subr.mxu0 0.0
    %1196 = vmatpush1.msra.mxu0 %v1153
    %1197 = vmatprep.subr.mxu0 0.0
    %1198 = vmatpush2.msra.mxu0 0.0
    %1199 = vmatprep.subr.mxu0 0.0
    %1200 = vmatpush2.msra.mxu0 0.0
    %1201 = vmatprep.subr.mxu0 0.0
    %1202 = vmatpush2.msra.mxu0 0.0
    %1203 = vmatprep.subr.mxu0 0.0
    %1204 = vmatpush2.msra.mxu0 0.0
    %1205 = vmatprep.subr.mxu0 0.0
    %1206 = vmatpush2.msra.mxu0 0.0
    %1207 = vmatprep.subr.mxu0 0.0
    %1208 = vmatpush2.msra.mxu0 0.0
    %1209 = vmatprep.subr.mxu0 0.0
    %1210 = vmatpush2.msra.mxu0 0.0
    %1211 = vmatprep.subr.mxu0 0.0
    %1212 = vmatpush2.msra.mxu0 0.0
    %1213 = vmatprep.subr.mxu0 0.0
    %1214 = vmatpush2.msra.mxu0 0.0
    %1215 = vmatprep.subr.mxu0 0.0
    %1216 = vmatpush2.msra.mxu0 0.0
    %1217 = vmatprep.subr.mxu0 0.0
    %1218 = vmatpush2.msra.mxu0 0.0
    %1219 = vmatprep.subr.mxu0 0.0
    %1220 = vmatpush2.msra.mxu0 0.0
    %1221 = vmatprep.subr.mxu0 0.0
    %1222 = vmatpush2.msra.mxu0 0.0
    %1223 = vmatprep.subr.mxu0 0.0
    %1224 = vmatpush2.msra.mxu0 0.0
    %1225 = vmatprep.subr.mxu0 0.0
    %1226 = vmatpush2.msra.mxu0 0.0
    %1227 = vmatprep.subr.mxu0 0.0
    %1228 = vmatpush2.msra.mxu0 0.0
    %1229 = vmatprep.mubr.f32.mxu0 0.0
    %1230 = vmatmul.mubr.f32.gmra.mxu0 %v892
    %v1231 = vpop.f32.mrf.mxu0
    %v1232 = vadd.f32 %v1163, %v1231
    %v1233 = vpop.f32.mrf.mxu0
    %1234 = vdwg.mxu0
    %v1235 = vmax.f32 %v1232, 0.0
    %s1236 = scalar_lea.vmem %s14, 64
    %v1237 = vld [vmem:[%s1236] sm:$0xff]
    %v1238 = vld [vmem:[%s1236 + $0x8] sm:$0xff]
    %v1239 = vld [vmem:[%s1236 + $0x10] sm:$0xff]
    %v1240 = vld [vmem:[%s1236 + $0x18] sm:$0xff]
    %v1241 = vld [vmem:[%s1236 + $0x20] sm:$0xff]
    %v1242 = vld [vmem:[%s1236 + $0x28] sm:$0xff]
    %v1243 = vld [vmem:[%s1236 + $0x30] sm:$0xff]
    %v1244 = vld [vmem:[%s1236 + $0x38] sm:$0xff]
    %s1245 = scalar_lea.vmem %s15, 1
    %v1246 = vld [vmem:[%s1245] sm:$0x1]
    %v1248 = vlaneseq
    %v1249 = vshrl.u32 %v1248, 7
    %v1250 = vsub.s32 0, %v1249
    %v1251 = vrot.slane %v1246, %v1250
    %v1254 = vsel %vm267, %v1235, 0
    %1256 = vmatprep.subr.mxu0 0.0
    %1257 = vmatpush1.msra.mxu0 0.0
    %1258 = vmatprep.subr.mxu0 0.0
    %1259 = vmatpush1.msra.mxu0 0.0
    %1260 = vmatprep.subr.mxu0 0.0
    %1261 = vmatpush1.msra.mxu0 0.0
    %1262 = vmatprep.subr.mxu0 0.0
    %1263 = vmatpush1.msra.mxu0 0.0
    %1264 = vmatprep.subr.mxu0 0.0
    %1265 = vmatpush1.msra.mxu0 0.0
    %1266 = vmatprep.subr.mxu0 0.0
    %1267 = vmatpush1.msra.mxu0 0.0
    %1268 = vmatprep.subr.mxu0 0.0
    %1269 = vmatpush1.msra.mxu0 0.0
    %1270 = vmatprep.subr.mxu0 0.0
    %1271 = vmatpush1.msra.mxu0 0.0
    %1272 = vmatprep.subr.mxu0 0.0
    %1273 = vmatpush1.msra.mxu0 %v1244
    %1274 = vmatprep.subr.mxu0 0.0
    %1275 = vmatpush1.msra.mxu0 %v1243
    %1276 = vmatprep.subr.mxu0 0.0
    %1277 = vmatpush1.msra.mxu0 %v1242
    %1278 = vmatprep.subr.mxu0 0.0
    %1279 = vmatpush1.msra.mxu0 %v1241
    %1280 = vmatprep.subr.mxu0 0.0
    %1281 = vmatpush1.msra.mxu0 %v1240
    %1282 = vmatprep.subr.mxu0 0.0
    %1283 = vmatpush1.msra.mxu0 %v1239
    %1284 = vmatprep.subr.mxu0 0.0
    %1285 = vmatpush1.msra.mxu0 %v1238
    %1286 = vmatprep.subr.mxu0 0.0
    %1287 = vmatpush1.msra.mxu0 %v1237
    %1288 = vmatprep.subr.mxu0 0.0
    %1289 = vmatpush2.msra.mxu0 0.0
    %1290 = vmatprep.subr.mxu0 0.0
    %1291 = vmatpush2.msra.mxu0 0.0
    %1292 = vmatprep.subr.mxu0 0.0
    %1293 = vmatpush2.msra.mxu0 0.0
    %1294 = vmatprep.subr.mxu0 0.0
    %1295 = vmatpush2.msra.mxu0 0.0
    %1296 = vmatprep.subr.mxu0 0.0
    %1297 = vmatpush2.msra.mxu0 0.0
    %1298 = vmatprep.subr.mxu0 0.0
    %1299 = vmatpush2.msra.mxu0 0.0
    %1300 = vmatprep.subr.mxu0 0.0
    %1301 = vmatpush2.msra.mxu0 0.0
    %1302 = vmatprep.subr.mxu0 0.0
    %1303 = vmatpush2.msra.mxu0 0.0
    %1304 = vmatprep.subr.mxu0 0.0
    %1305 = vmatpush2.msra.mxu0 0.0
    %1306 = vmatprep.subr.mxu0 0.0
    %1307 = vmatpush2.msra.mxu0 0.0
    %1308 = vmatprep.subr.mxu0 0.0
    %1309 = vmatpush2.msra.mxu0 0.0
    %1310 = vmatprep.subr.mxu0 0.0
    %1311 = vmatpush2.msra.mxu0 0.0
    %1312 = vmatprep.subr.mxu0 0.0
    %1313 = vmatpush2.msra.mxu0 0.0
    %1314 = vmatprep.subr.mxu0 0.0
    %1315 = vmatpush2.msra.mxu0 0.0
    %1316 = vmatprep.subr.mxu0 0.0
    %1317 = vmatpush2.msra.mxu0 0.0
    %1318 = vmatprep.subr.mxu0 0.0
    %1319 = vmatpush2.msra.mxu0 0.0
    %1320 = vmatprep.mubr.f32.mxu0 0.0
    %1321 = vmatmul.mubr.f32.gmra.mxu0 %v1254
    %v1322 = vpop.f32.mrf.mxu0
    %v1323 = vadd.f32 %v1251, %v1322
    %v1324 = vpop.f32.mrf.mxu0
    %1325 = vdwg.mxu0
    %v1326 = vmax.f32 %v1323, 0.0
    %1327 = vset.pattern.permute.xlu0 1
    %1328 = vperm.xlu0 %1327, %v974
    %v1329 = vpop.permute.xlu0 %1328
    %v1331 = vmul.f32 %v1326, %v1329
    %v1332 = vadd.f32 %v1151, %v1331
    %s1333 = scalar_lea.vmem %s12, 64
    %v1334 = vld [vmem:[%s1333] sm:$0xff]
    %v1335 = vld [vmem:[%s1333 + $0x8] sm:$0xff]
    %v1336 = vld [vmem:[%s1333 + $0x10] sm:$0xff]
    %v1337 = vld [vmem:[%s1333 + $0x18] sm:$0xff]
    %s1338 = scalar_lea.vmem %s13, 2
    %v1339 = vld [vmem:[%s1338] sm:$0x1]
    %v1341 = vlaneseq
    %v1342 = vshrl.u32 %v1341, 7
    %v1343 = vsub.s32 0, %v1342
    %v1344 = vrot.slane %v1339, %v1343
    %1346 = vmatprep.subr.mxu0 0.0
    %1347 = vmatpush1.msra.mxu0 0.0
    %1348 = vmatprep.subr.mxu0 0.0
    %1349 = vmatpush1.msra.mxu0 0.0
    %1350 = vmatprep.subr.mxu0 0.0
    %1351 = vmatpush1.msra.mxu0 0.0
    %1352 = vmatprep.subr.mxu0 0.0
    %1353 = vmatpush1.msra.mxu0 0.0
    %1354 = vmatprep.subr.mxu0 0.0
    %1355 = vmatpush1.msra.mxu0 0.0
    %1356 = vmatprep.subr.mxu0 0.0
    %1357 = vmatpush1.msra.mxu0 0.0
    %1358 = vmatprep.subr.mxu0 0.0
    %1359 = vmatpush1.msra.mxu0 0.0
    %1360 = vmatprep.subr.mxu0 0.0
    %1361 = vmatpush1.msra.mxu0 0.0
    %1362 = vmatprep.subr.mxu0 0.0
    %1363 = vmatpush1.msra.mxu0 0.0
    %1364 = vmatprep.subr.mxu0 0.0
    %1365 = vmatpush1.msra.mxu0 0.0
    %1366 = vmatprep.subr.mxu0 0.0
    %1367 = vmatpush1.msra.mxu0 0.0
    %1368 = vmatprep.subr.mxu0 0.0
    %1369 = vmatpush1.msra.mxu0 0.0
    %1370 = vmatprep.subr.mxu0 0.0
    %1371 = vmatpush1.msra.mxu0 %v1337
    %1372 = vmatprep.subr.mxu0 0.0
    %1373 = vmatpush1.msra.mxu0 %v1336
    %1374 = vmatprep.subr.mxu0 0.0
    %1375 = vmatpush1.msra.mxu0 %v1335
    %1376 = vmatprep.subr.mxu0 0.0
    %1377 = vmatpush1.msra.mxu0 %v1334
    %1378 = vmatprep.subr.mxu0 0.0
    %1379 = vmatpush2.msra.mxu0 0.0
    %1380 = vmatprep.subr.mxu0 0.0
    %1381 = vmatpush2.msra.mxu0 0.0
    %1382 = vmatprep.subr.mxu0 0.0
    %1383 = vmatpush2.msra.mxu0 0.0
    %1384 = vmatprep.subr.mxu0 0.0
    %1385 = vmatpush2.msra.mxu0 0.0
    %1386 = vmatprep.subr.mxu0 0.0
    %1387 = vmatpush2.msra.mxu0 0.0
    %1388 = vmatprep.subr.mxu0 0.0
    %1389 = vmatpush2.msra.mxu0 0.0
    %1390 = vmatprep.subr.mxu0 0.0
    %1391 = vmatpush2.msra.mxu0 0.0
    %1392 = vmatprep.subr.mxu0 0.0
    %1393 = vmatpush2.msra.mxu0 0.0
    %1394 = vmatprep.subr.mxu0 0.0
    %1395 = vmatpush2.msra.mxu0 0.0
    %1396 = vmatprep.subr.mxu0 0.0
    %1397 = vmatpush2.msra.mxu0 0.0
    %1398 = vmatprep.subr.mxu0 0.0
    %1399 = vmatpush2.msra.mxu0 0.0
    %1400 = vmatprep.subr.mxu0 0.0
    %1401 = vmatpush2.msra.mxu0 0.0
    %1402 = vmatprep.subr.mxu0 0.0
    %1403 = vmatpush2.msra.mxu0 0.0
    %1404 = vmatprep.subr.mxu0 0.0
    %1405 = vmatpush2.msra.mxu0 0.0
    %1406 = vmatprep.subr.mxu0 0.0
    %1407 = vmatpush2.msra.mxu0 0.0
    %1408 = vmatprep.subr.mxu0 0.0
    %1409 = vmatpush2.msra.mxu0 0.0
    %1410 = vmatprep.mubr.f32.mxu0 0.0
    %1411 = vmatmul.mubr.f32.gmra.mxu0 %v892
    %v1412 = vpop.f32.mrf.mxu0
    %v1413 = vadd.f32 %v1344, %v1412
    %v1414 = vpop.f32.mrf.mxu0
    %1415 = vdwg.mxu0
    %v1416 = vmax.f32 %v1413, 0.0
    %s1417 = scalar_lea.vmem %s14, 128
    %v1418 = vld [vmem:[%s1417] sm:$0xff]
    %v1419 = vld [vmem:[%s1417 + $0x8] sm:$0xff]
    %v1420 = vld [vmem:[%s1417 + $0x10] sm:$0xff]
    %v1421 = vld [vmem:[%s1417 + $0x18] sm:$0xff]
    %v1422 = vld [vmem:[%s1417 + $0x20] sm:$0xff]
    %v1423 = vld [vmem:[%s1417 + $0x28] sm:$0xff]
    %v1424 = vld [vmem:[%s1417 + $0x30] sm:$0xff]
    %v1425 = vld [vmem:[%s1417 + $0x38] sm:$0xff]
    %s1426 = scalar_lea.vmem %s15, 2
    %v1427 = vld [vmem:[%s1426] sm:$0x1]
    %v1429 = vlaneseq
    %v1430 = vshrl.u32 %v1429, 7
    %v1431 = vsub.s32 0, %v1430
    %v1432 = vrot.slane %v1427, %v1431
    %v1435 = vsel %vm267, %v1416, 0
    %1437 = vmatprep.subr.mxu0 0.0
    %1438 = vmatpush1.msra.mxu0 0.0
    %1439 = vmatprep.subr.mxu0 0.0
    %1440 = vmatpush1.msra.mxu0 0.0
    %1441 = vmatprep.subr.mxu0 0.0
    %1442 = vmatpush1.msra.mxu0 0.0
    %1443 = vmatprep.subr.mxu0 0.0
    %1444 = vmatpush1.msra.mxu0 0.0
    %1445 = vmatprep.subr.mxu0 0.0
    %1446 = vmatpush1.msra.mxu0 0.0
    %1447 = vmatprep.subr.mxu0 0.0
    %1448 = vmatpush1.msra.mxu0 0.0
    %1449 = vmatprep.subr.mxu0 0.0
    %1450 = vmatpush1.msra.mxu0 0.0
    %1451 = vmatprep.subr.mxu0 0.0
    %1452 = vmatpush1.msra.mxu0 0.0
    %1453 = vmatprep.subr.mxu0 0.0
    %1454 = vmatpush1.msra.mxu0 %v1425
    %1455 = vmatprep.subr.mxu0 0.0
    %1456 = vmatpush1.msra.mxu0 %v1424
    %1457 = vmatprep.subr.mxu0 0.0
    %1458 = vmatpush1.msra.mxu0 %v1423
    %1459 = vmatprep.subr.mxu0 0.0
    %1460 = vmatpush1.msra.mxu0 %v1422
    %1461 = vmatprep.subr.mxu0 0.0
    %1462 = vmatpush1.msra.mxu0 %v1421
    %1463 = vmatprep.subr.mxu0 0.0
    %1464 = vmatpush1.msra.mxu0 %v1420
    %1465 = vmatprep.subr.mxu0 0.0
    %1466 = vmatpush1.msra.mxu0 %v1419
    %1467 = vmatprep.subr.mxu0 0.0
    %1468 = vmatpush1.msra.mxu0 %v1418
    %1469 = vmatprep.subr.mxu0 0.0
    %1470 = vmatpush2.msra.mxu0 0.0
    %1471 = vmatprep.subr.mxu0 0.0
    %1472 = vmatpush2.msra.mxu0 0.0
    %1473 = vmatprep.subr.mxu0 0.0
    %1474 = vmatpush2.msra.mxu0 0.0
    %1475 = vmatprep.subr.mxu0 0.0
    %1476 = vmatpush2.msra.mxu0 0.0
    %1477 = vmatprep.subr.mxu0 0.0
    %1478 = vmatpush2.msra.mxu0 0.0
    %1479 = vmatprep.subr.mxu0 0.0
    %1480 = vmatpush2.msra.mxu0 0.0
    %1481 = vmatprep.subr.mxu0 0.0
    %1482 = vmatpush2.msra.mxu0 0.0
    %1483 = vmatprep.subr.mxu0 0.0
    %1484 = vmatpush2.msra.mxu0 0.0
    %1485 = vmatprep.subr.mxu0 0.0
    %1486 = vmatpush2.msra.mxu0 0.0
    %1487 = vmatprep.subr.mxu0 0.0
    %1488 = vmatpush2.msra.mxu0 0.0
    %1489 = vmatprep.subr.mxu0 0.0
    %1490 = vmatpush2.msra.mxu0 0.0
    %1491 = vmatprep.subr.mxu0 0.0
    %1492 = vmatpush2.msra.mxu0 0.0
    %1493 = vmatprep.subr.mxu0 0.0
    %1494 = vmatpush2.msra.mxu0 0.0
    %1495 = vmatprep.subr.mxu0 0.0
    %1496 = vmatpush2.msra.mxu0 0.0
    %1497 = vmatprep.subr.mxu0 0.0
    %1498 = vmatpush2.msra.mxu0 0.0
    %1499 = vmatprep.subr.mxu0 0.0
    %1500 = vmatpush2.msra.mxu0 0.0
    %1501 = vmatprep.mubr.f32.mxu0 0.0
    %1502 = vmatmul.mubr.f32.gmra.mxu0 %v1435
    %v1503 = vpop.f32.mrf.mxu0
    %v1504 = vadd.f32 %v1432, %v1503
    %v1505 = vpop.f32.mrf.mxu0
    %1506 = vdwg.mxu0
    %v1507 = vmax.f32 %v1504, 0.0
    %1508 = vset.pattern.permute.xlu0 2
    %1509 = vperm.xlu0 %1508, %v974
    %v1510 = vpop.permute.xlu0 %1509
    %v1512 = vmul.f32 %v1507, %v1510
    %v1513 = vadd.f32 %v1332, %v1512
    %v1514 = vld [vmem:[%s18] sm:$0xff]
    %v1515 = vld [vmem:[%s18 + $0x8] sm:$0xff]
    %v1516 = vld [vmem:[%s18 + $0x10] sm:$0xff]
    %v1517 = vld [vmem:[%s18 + $0x18] sm:$0xff]
    %v1518 = vld [vmem:[%s19] sm:$0x1]
    %v1520 = vlaneseq
    %v1521 = vshrl.u32 %v1520, 7
    %v1522 = vsub.s32 0, %v1521
    %v1523 = vrot.slane %v1518, %v1522
    %v1526 = vsel %vm84, %v1513, 0
    %1528 = vmatprep.subr.mxu0 0.0
    %1529 = vmatpush1.msra.mxu0 0.0
    %1530 = vmatprep.subr.mxu0 0.0
    %1531 = vmatpush1.msra.mxu0 0.0
    %1532 = vmatprep.subr.mxu0 0.0
    %1533 = vmatpush1.msra.mxu0 0.0
    %1534 = vmatprep.subr.mxu0 0.0
    %1535 = vmatpush1.msra.mxu0 0.0
    %1536 = vmatprep.subr.mxu0 0.0
    %1537 = vmatpush1.msra.mxu0 0.0
    %1538 = vmatprep.subr.mxu0 0.0
    %1539 = vmatpush1.msra.mxu0 0.0
    %1540 = vmatprep.subr.mxu0 0.0
    %1541 = vmatpush1.msra.mxu0 0.0
    %1542 = vmatprep.subr.mxu0 0.0
    %1543 = vmatpush1.msra.mxu0 0.0
    %1544 = vmatprep.subr.mxu0 0.0
    %1545 = vmatpush1.msra.mxu0 0.0
    %1546 = vmatprep.subr.mxu0 0.0
    %1547 = vmatpush1.msra.mxu0 0.0
    %1548 = vmatprep.subr.mxu0 0.0
    %1549 = vmatpush1.msra.mxu0 0.0
    %1550 = vmatprep.subr.mxu0 0.0
    %1551 = vmatpush1.msra.mxu0 0.0
    %1552 = vmatprep.subr.mxu0 0.0
    %1553 = vmatpush1.msra.mxu0 %v1517
    %1554 = vmatprep.subr.mxu0 0.0
    %1555 = vmatpush1.msra.mxu0 %v1516
    %1556 = vmatprep.subr.mxu0 0.0
    %1557 = vmatpush1.msra.mxu0 %v1515
    %1558 = vmatprep.subr.mxu0 0.0
    %1559 = vmatpush1.msra.mxu0 %v1514
    %1560 = vmatprep.subr.mxu0 0.0
    %1561 = vmatpush2.msra.mxu0 0.0
    %1562 = vmatprep.subr.mxu0 0.0
    %1563 = vmatpush2.msra.mxu0 0.0
    %1564 = vmatprep.subr.mxu0 0.0
    %1565 = vmatpush2.msra.mxu0 0.0
    %1566 = vmatprep.subr.mxu0 0.0
    %1567 = vmatpush2.msra.mxu0 0.0
    %1568 = vmatprep.subr.mxu0 0.0
    %1569 = vmatpush2.msra.mxu0 0.0
    %1570 = vmatprep.subr.mxu0 0.0
    %1571 = vmatpush2.msra.mxu0 0.0
    %1572 = vmatprep.subr.mxu0 0.0
    %1573 = vmatpush2.msra.mxu0 0.0
    %1574 = vmatprep.subr.mxu0 0.0
    %1575 = vmatpush2.msra.mxu0 0.0
    %1576 = vmatprep.subr.mxu0 0.0
    %1577 = vmatpush2.msra.mxu0 0.0
    %1578 = vmatprep.subr.mxu0 0.0
    %1579 = vmatpush2.msra.mxu0 0.0
    %1580 = vmatprep.subr.mxu0 0.0
    %1581 = vmatpush2.msra.mxu0 0.0
    %1582 = vmatprep.subr.mxu0 0.0
    %1583 = vmatpush2.msra.mxu0 0.0
    %1584 = vmatprep.subr.mxu0 0.0
    %1585 = vmatpush2.msra.mxu0 0.0
    %1586 = vmatprep.subr.mxu0 0.0
    %1587 = vmatpush2.msra.mxu0 0.0
    %1588 = vmatprep.subr.mxu0 0.0
    %1589 = vmatpush2.msra.mxu0 0.0
    %1590 = vmatprep.subr.mxu0 0.0
    %1591 = vmatpush2.msra.mxu0 0.0
    %1592 = vmatprep.mubr.f32.mxu0 0.0
    %1593 = vmatmul.mubr.f32.gmra.mxu0 %v1526
    %v1594 = vpop.f32.mrf.mxu0
    %v1595 = vadd.f32 %v1523, %v1594
    %v1596 = vpop.f32.mrf.mxu0
    %1597 = vdwg.mxu0
    %v1598 = vmax.f32 %v1595, 0.0
    %v1599 = vld [vmem:[%s20] sm:$0xff]
    %v1600 = vld [vmem:[%s20 + $0x8] sm:$0xff]
    %v1601 = vld [vmem:[%s21] sm:$0x1]
    %v1603 = vlaneseq
    %v1604 = vshrl.u32 %v1603, 7
    %v1605 = vsub.s32 0, %v1604
    %v1606 = vrot.slane %v1601, %v1605
    %v1609 = vsel %vm804, %v1598, 0
    %1611 = vmatprep.subr.mxu0 0.0
    %1612 = vmatpush1.msra.mxu0 0.0
    %1613 = vmatprep.subr.mxu0 0.0
    %1614 = vmatpush1.msra.mxu0 0.0
    %1615 = vmatprep.subr.mxu0 0.0
    %1616 = vmatpush1.msra.mxu0 0.0
    %1617 = vmatprep.subr.mxu0 0.0
    %1618 = vmatpush1.msra.mxu0 0.0
    %1619 = vmatprep.subr.mxu0 0.0
    %1620 = vmatpush1.msra.mxu0 0.0
    %1621 = vmatprep.subr.mxu0 0.0
    %1622 = vmatpush1.msra.mxu0 0.0
    %1623 = vmatprep.subr.mxu0 0.0
    %1624 = vmatpush1.msra.mxu0 0.0
    %1625 = vmatprep.subr.mxu0 0.0
    %1626 = vmatpush1.msra.mxu0 0.0
    %1627 = vmatprep.subr.mxu0 0.0
    %1628 = vmatpush1.msra.mxu0 0.0
    %1629 = vmatprep.subr.mxu0 0.0
    %1630 = vmatpush1.msra.mxu0 0.0
    %1631 = vmatprep.subr.mxu0 0.0
    %1632 = vmatpush1.msra.mxu0 0.0
    %1633 = vmatprep.subr.mxu0 0.0
    %1634 = vmatpush1.msra.mxu0 0.0
    %1635 = vmatprep.subr.mxu0 0.0
    %1636 = vmatpush1.msra.mxu0 0.0
    %1637 = vmatprep.subr.mxu0 0.0
    %1638 = vmatpush1.msra.mxu0 0.0
    %1639 = vmatprep.subr.mxu0 0.0
    %1640 = vmatpush1.msra.mxu0 %v1600
    %1641 = vmatprep.subr.mxu0 0.0
    %1642 = vmatpush1.msra.mxu0 %v1599
    %1643 = vmatprep.subr.mxu0 0.0
    %1644 = vmatpush2.msra.mxu0 0.0
    %1645 = vmatprep.subr.mxu0 0.0
    %1646 = vmatpush2.msra.mxu0 0.0
    %1647 = vmatprep.subr.mxu0 0.0
    %1648 = vmatpush2.msra.mxu0 0.0
    %1649 = vmatprep.subr.mxu0 0.0
    %1650 = vmatpush2.msra.mxu0 0.0
    %1651 = vmatprep.subr.mxu0 0.0
    %1652 = vmatpush2.msra.mxu0 0.0
    %1653 = vmatprep.subr.mxu0 0.0
    %1654 = vmatpush2.msra.mxu0 0.0
    %1655 = vmatprep.subr.mxu0 0.0
    %1656 = vmatpush2.msra.mxu0 0.0
    %1657 = vmatprep.subr.mxu0 0.0
    %1658 = vmatpush2.msra.mxu0 0.0
    %1659 = vmatprep.subr.mxu0 0.0
    %1660 = vmatpush2.msra.mxu0 0.0
    %1661 = vmatprep.subr.mxu0 0.0
    %1662 = vmatpush2.msra.mxu0 0.0
    %1663 = vmatprep.subr.mxu0 0.0
    %1664 = vmatpush2.msra.mxu0 0.0
    %1665 = vmatprep.subr.mxu0 0.0
    %1666 = vmatpush2.msra.mxu0 0.0
    %1667 = vmatprep.subr.mxu0 0.0
    %1668 = vmatpush2.msra.mxu0 0.0
    %1669 = vmatprep.subr.mxu0 0.0
    %1670 = vmatpush2.msra.mxu0 0.0
    %1671 = vmatprep.subr.mxu0 0.0
    %1672 = vmatpush2.msra.mxu0 0.0
    %1673 = vmatprep.subr.mxu0 0.0
    %1674 = vmatpush2.msra.mxu0 0.0
    %1675 = vmatprep.mubr.f32.mxu0 0.0
    %1676 = vmatmul.mubr.f32.gmra.mxu0 %v1609
    %v1677 = vpop.f32.mrf.mxu0
    %v1678 = vadd.f32 %v1606, %v1677
    %v1679 = vpop.f32.mrf.mxu0
    %1680 = vdwg.mxu0
    %v1681 = vmax.f32 %v1678, 0.0
    %v1682 = vmul.f32 %v878, %v1681
    %vm1683 = vcmask 64512
    %v1684 = vsel %vm1683, %v1682, 0.0
    %1685 = vadd.xlane.f32.xlu0 %v1684
    %v1686 = vpop.xlane.xlu0 %1685
    %v1687 = vlaneseq
    %v1688 = vand.u32 %v1687, 127
    %vm1689 = vcmp.eq.s32.totalorder %v1688, 0
    %v1690 = vsel %vm1689, %v1686, 0.0
    %1691 = vst [vmem:[#allocation2] sm:$0xff] %v1690
    // Predicated region
    $region90: #{tpu_custom_call.1} parent=1 // pred_check
      _
    $region91: #{tpu_custom_call.1} parent=1 // pred_check_branch
      %1693 = sbr.rel (0) target = $region93
    $region92: #{tpu_custom_call.1} parent=1 // pred_region
      %s1695 = ssub.s32 128, 128
      %1696 = vsyncadd [#allocation3], %s1695
      %s1698 = sshll.u32 [#allocation2], 4
      %s1699 = int_to_ptr.vmem [resolvable:$true] %s1698
      %1701 = dma.vmem_to_hbm [thread:$0]  %s1699, 128, %s22, [#allocation3]
    $region93: #{tpu_custom_call.1} parent=1 // pred_fallthru
      _
    // Predicated region
    $region94: #{tpu_custom_call.1} parent=1 // pred_check
      _
    $region95: #{tpu_custom_call.1} parent=1 // pred_check_branch
      %1703 = sbr.rel (0) target = $region97
    $region96: #{tpu_custom_call.1} parent=1 // pred_region
      %1704 = dma.done [#allocation3], 128
    $region97: #{tpu_custom_call.1} parent=1 // pred_fallthru
      _
    %1705 = vsyncpa [#allocation3], 1

</llo_original>
